<compile_context>
chip_gen: v6e
topology: v6e:2x2x1
jax: 0.10.0
libtpu: 0.0.40
codegen_flags: <defaults>
</compile_context>

<pallas_src>
import functools

import jax
import jax.numpy as jnp
from jax import lax
from jax.experimental import pallas as pl
from jax.experimental.pallas import tpu as pltpu


# ----------------------------------------------------------------------------
# Fully fused kernel: LSTM stack (single consumed batch row) + MLP head + softmax.
# ----------------------------------------------------------------------------
def _fused_rnn_net_kernel(n_lstm, n_lin, use_tanh, S, H, *refs):
    n_in = 1 + 3 * n_lstm + 2 * n_lin + 2
    in_refs = refs[:n_in]
    out_ref = refs[n_in]

    x_ref = in_refs[0]                                        # (S, D_in) f32
    lstm_refs = in_refs[1:1 + 3 * n_lstm]
    lin_refs = in_refs[1 + 3 * n_lstm:1 + 3 * n_lstm + 2 * n_lin]
    wout_ref, bout_ref = in_refs[-2], in_refs[-1]

    # Lane mask selecting the "g" gate block (lanes [2H, 3H)) in the 4H-wide gate row.
    # Hoisted out of all loops (broadcasts are not CSE'd).
    lane = lax.broadcasted_iota(jnp.int32, (1, 4 * H), 1)
    g_mask = (lane >= 2 * H) & (lane < 3 * H)

    seq = x_ref[...]                                          # (S, D_l) f32
    for l in range(n_lstm):
        wih = lstm_refs[3 * l][...]                           # (D_l, 4H) bf16
        whh = lstm_refs[3 * l + 1][...]                       # (H, 4H)   bf16
        b = lstm_refs[3 * l + 2][...]                         # (1, 4H)   f32

        # Hoisted input projection over all timesteps: one fat matmul off the serial
        # h-dependency chain.  bf16 operands, f32 accumulation.
        gates_x = jnp.dot(seq.astype(jnp.bfloat16), wih,
                          preferred_element_type=jnp.float32) + b   # (S, 4H) f32

        h = jnp.zeros((1, H), jnp.float32)
        c = jnp.zeros((1, H), jnp.float32)
        hs = []

        for t in range(S):                                    # static unrolled time loop
            g_all = gates_x[t:t + 1, :] + jnp.dot(
                h.astype(jnp.bfloat16), whh,
                preferred_element_type=jnp.float32)           # (1, 4H) f32

            # Two full-width EUP passes + lane-mask select; PyTorch gate order i,f,g,o.
            act = jnp.where(g_mask, jnp.tanh(g_all), jax.nn.sigmoid(g_all))
            i_g = act[:, 0 * H:1 * H]
            f_g = act[:, 1 * H:2 * H]
            g_g = act[:, 2 * H:3 * H]
            o_g = act[:, 3 * H:4 * H]

            c = f_g * c + i_g * g_g
            h = o_g * jnp.tanh(c)
            hs.append(h)                                      # register-resident

        seq = jnp.concatenate(hs, axis=0)                     # (S, H) f32, next layer / head

    # MLP head on (S, H), then output projection + softmax over classes.
    feat = seq                                                # (S, H)
    for i in range(n_lin):
        w = lin_refs[2 * i][...]                              # (H, H) bf16
        bb = lin_refs[2 * i + 1][...]                         # (1, H) f32
        feat = jnp.dot(feat.astype(jnp.bfloat16), w,
                       preferred_element_type=jnp.float32) + bb
        feat = jnp.tanh(feat) if use_tanh else jnp.maximum(feat, 0.0)

    z = jnp.dot(feat.astype(jnp.bfloat16), wout_ref[...],
                preferred_element_type=jnp.float32) + bout_ref[...]   # (S, C)
    z = z - jnp.max(z, axis=-1, keepdims=True)
    e = jnp.exp(z)
    # Exact divide: rows sum to 1 to f32 precision (approx reciprocal removed).
    out_ref[...] = (e / jnp.sum(e, axis=-1, keepdims=True)).astype(out_ref.dtype)


def rnn_net_forward(x, params, act_flag):
    """x: (S, B, D_in) f32 -> (S, C) f32 softmax probabilities (one fused pallas_call)."""
    S, B, D_in = x.shape
    H = params["lstm"][0][1].shape[0]
    C = params["wout_t"].shape[1]
    n_lstm = len(params["lstm"])
    n_lin = len(params["lin"])

    # Dead-batch elimination: only batch row B-1 reaches out1 / the MLP head, and the
    # LSTM is batch-independent (dropout=0), so run the whole stack on that row only.
    x_last = x[:, -1, :]                                      # (S, D_in)

    flat = [x_last]
    in_specs = [pl.BlockSpec((S, D_in), lambda: (0, 0))]
    for (wih_t, whh_t, b) in params["lstm"]:
        d_l = wih_t.shape[0]
        flat += [wih_t.astype(jnp.bfloat16), whh_t.astype(jnp.bfloat16), b]
        in_specs += [
            pl.BlockSpec((d_l, 4 * H), lambda: (0, 0)),
            pl.BlockSpec((H, 4 * H), lambda: (0, 0)),
            pl.BlockSpec((1, 4 * H), lambda: (0, 0)),
        ]
    for (w_t, b) in params["lin"]:
        flat += [w_t.astype(jnp.bfloat16), b]
        in_specs += [pl.BlockSpec((H, H), lambda: (0, 0)),
                     pl.BlockSpec((1, H), lambda: (0, 0))]
    flat += [params["wout_t"].astype(jnp.bfloat16), params["bout"]]
    in_specs += [pl.BlockSpec((H, C), lambda: (0, 0)),
                 pl.BlockSpec((1, C), lambda: (0, 0))]

    kernel = functools.partial(_fused_rnn_net_kernel, n_lstm, n_lin,
                               act_flag == "Tanh", S, H)
    return pl.pallas_call(
        kernel,
        out_shape=jax.ShapeDtypeStruct((S, C), jnp.float32),
        grid_spec=pltpu.PrefetchScalarGridSpec(
            num_scalar_prefetch=0,
            grid=(),
            in_specs=in_specs,
            out_specs=pl.BlockSpec((S, C), lambda: (0, 0)),
        ),
    )(*flat)


# ----------------------------------------------------------------------------
# Pure-JAX reference (for correctness check; full-batch f32, follows the module verbatim)
# ----------------------------------------------------------------------------
def rnn_net_reference(x, params, act_flag):
    def one_layer(xs, wih_t, whh_t, b):
        B = xs.shape[1]
        H = whh_t.shape[0]

        def step(carry, x_t):
            h, c = carry
            gates = x_t @ wih_t + h @ whh_t + b[0]
            i_g = jax.nn.sigmoid(gates[:, 0 * H:1 * H])
            f_g = jax.nn.sigmoid(gates[:, 1 * H:2 * H])
            g_g = jnp.tanh(gates[:, 2 * H:3 * H])
            o_g = jax.nn.sigmoid(gates[:, 3 * H:4 * H])
            c = f_g * c + i_g * g_g
            h = o_g * jnp.tanh(c)
            return (h, c), h

        init = (jnp.zeros((B, H), jnp.float32), jnp.zeros((B, H), jnp.float32))
        _, hs = lax.scan(step, init, xs)
        return hs

    h = x
    for (wih_t, whh_t, b) in params["lstm"]:
        h = one_layer(h, wih_t, whh_t, b)
    out1 = h[:, -1, :]                    # last BATCH element per timestep (module verbatim)
    for (w_t, bb) in params["lin"]:
        out1 = out1 @ w_t + bb[0]
        out1 = jnp.tanh(out1) if act_flag == "Tanh" else jnp.maximum(out1, 0.0)
    z = out1 @ params["wout_t"] + params["bout"][0]
    return jax.nn.softmax(z, axis=1)


# ----------------------------------------------------------------------------
# Parameter construction (deterministic, PyTorch-like uniform init)
# ----------------------------------------------------------------------------
def make_params(key, input_dim, hidden, n_layers, n_lin, num_classes):
    k = 1.0 / jnp.sqrt(hidden)

    def uni(key, shape):
        return jax.random.uniform(key, shape, jnp.float32, minval=-k, maxval=k)

    params = {"lstm": [], "lin": []}
    keys = jax.random.split(key, 4 * n_layers + 2 * n_lin + 2)
    idx = 0
    for l in range(n_layers):
        d_in = input_dim if l == 0 else hidden
        wih = uni(keys[idx], (4 * hidden, d_in)); idx += 1
        whh = uni(keys[idx], (4 * hidden, hidden)); idx += 1
        bih = uni(keys[idx], (4 * hidden,)); idx += 1
        bhh = uni(keys[idx], (4 * hidden,)); idx += 1
        params["lstm"].append((wih.T, whh.T, (bih + bhh).reshape(1, 4 * hidden)))
    for _ in range(n_lin):
        w = uni(keys[idx], (hidden, hidden)); idx += 1
        b = uni(keys[idx], (hidden,)); idx += 1
        params["lin"].append((w.T, b.reshape(1, hidden)))
    wout = uni(keys[idx], (num_classes, hidden)); idx += 1
    bout = uni(keys[idx], (num_classes,)); idx += 1
    params["wout_t"] = wout.T
    params["bout"] = bout.reshape(1, num_classes)
    return params


if __name__ == "__main__":
    # Module config: RNNNet(inputDim=16, hiddenLayerSize=32, nLayers=2, num_classes=5,
    #                       drpOut=0.0, NumLinLayers=2, ActFnctFlag='Tanh')
    SEQ, BATCH, INPUT_DIM, HIDDEN, N_LAYERS, N_LIN, NUM_CLASSES = 8, 4, 16, 32, 2, 2, 5
    ACT = "Tanh"

    root = jax.random.PRNGKey(0)
    kx, kp = jax.random.split(root)
    x = jax.random.normal(kx, (SEQ, BATCH, INPUT_DIM), jnp.float32)
    params = make_params(kp, INPUT_DIM, HIDDEN, N_LAYERS, N_LIN, NUM_CLASSES)

    out = jax.block_until_ready(rnn_net_forward(x, params, ACT))
    ref = jax.block_until_ready(rnn_net_reference(x, params, ACT))

    assert out.shape == (SEQ, NUM_CLASSES), out.shape
    # Exact divide in the softmax -> rows sum to 1 to f32 precision.
    assert jnp.allclose(jnp.sum(out, axis=1), 1.0, atol=1e-5)
    # bf16 MXU operands (f32 accumulation) vs. full-f32 reference -> relaxed tolerance.
    assert jnp.allclose(out, ref, atol=2e-2, rtol=2e-2), float(jnp.max(jnp.abs(out - ref)))

    print("KERNEL_OK")
</pallas_src>

<mosaic_0001>
module attributes {stable_mosaic.version = 11 : i64} {
  func.func @_fused_rnn_net_kernel(%arg0: memref<8x16xf32, #tpu.memory_space<vmem>>, %arg1: memref<16x128xbf16, #tpu.memory_space<vmem>>, %arg2: memref<32x128xbf16, #tpu.memory_space<vmem>>, %arg3: memref<1x128xf32, #tpu.memory_space<vmem>>, %arg4: memref<32x128xbf16, #tpu.memory_space<vmem>>, %arg5: memref<32x128xbf16, #tpu.memory_space<vmem>>, %arg6: memref<1x128xf32, #tpu.memory_space<vmem>>, %arg7: memref<32x32xbf16, #tpu.memory_space<vmem>>, %arg8: memref<1x32xf32, #tpu.memory_space<vmem>>, %arg9: memref<32x32xbf16, #tpu.memory_space<vmem>>, %arg10: memref<1x32xf32, #tpu.memory_space<vmem>>, %arg11: memref<32x5xbf16, #tpu.memory_space<vmem>>, %arg12: memref<1x5xf32, #tpu.memory_space<vmem>>, %arg13: memref<8x5xf32, #tpu.memory_space<vmem>>) attributes {dimension_semantics = [], scalar_prefetch = 0 : i64, scratch_operands = 0 : i64, tpu.core_type = #tpu.core_type<tc>} {
    %0 = tpu.iota {dimensions = array<i32: 1>} : vector<1x128xi32>
    %c64_i32 = arith.constant 64 : i32
    %1 = vector.broadcast %c64_i32 : i32 to vector<1x128xi32>
    %2 = arith.cmpi sge, %0, %1 : vector<1x128xi32>
    %c96_i32 = arith.constant 96 : i32
    %3 = vector.broadcast %c96_i32 : i32 to vector<1x128xi32>
    %4 = arith.cmpi slt, %0, %3 : vector<1x128xi32>
    %5 = arith.andi %2, %4 : vector<1x128xi1>
    %c0 = arith.constant 0 : index
    %c0_0 = arith.constant 0 : index
    %6 = vector.load %arg0[%c0, %c0_0] : memref<8x16xf32, #tpu.memory_space<vmem>>, vector<8x16xf32>
    %c0_1 = arith.constant 0 : index
    %c0_2 = arith.constant 0 : index
    %7 = vector.load %arg1[%c0_1, %c0_2] : memref<16x128xbf16, #tpu.memory_space<vmem>>, vector<16x128xbf16>
    %c0_3 = arith.constant 0 : index
    %c0_4 = arith.constant 0 : index
    %8 = vector.load %arg2[%c0_3, %c0_4] : memref<32x128xbf16, #tpu.memory_space<vmem>>, vector<32x128xbf16>
    %c0_5 = arith.constant 0 : index
    %c0_6 = arith.constant 0 : index
    %9 = vector.load %arg3[%c0_5, %c0_6] : memref<1x128xf32, #tpu.memory_space<vmem>>, vector<1x128xf32>
    %10 = arith.truncf %6 : vector<8x16xf32> to vector<8x16xbf16>
    %cst = arith.constant dense<0.000000e+00> : vector<8x128xf32>
    %11 = tpu.matmul %10, %7, %cst {dimension_numbers = #tpu.dot_dimension_numbers<[1], [0], [0], [1], [0, 0, 1, 1], [], []>} : vector<8x16xbf16>, vector<16x128xbf16>, vector<8x128xf32> -> vector<8x128xf32>
    %12 = vector.broadcast %9 : vector<1x128xf32> to vector<8x128xf32>
    %13 = arith.addf %11, %12 : vector<8x128xf32>
    %cst_7 = arith.constant 0.000000e+00 : f32
    %14 = vector.broadcast %cst_7 : f32 to vector<1x32xf32>
    %cst_8 = arith.constant 0.000000e+00 : f32
    %15 = vector.broadcast %cst_8 : f32 to vector<1x32xf32>
    %16 = vector.extract_strided_slice %13 {offsets = [0, 0], sizes = [1, 128], strides = [1, 1]} : vector<8x128xf32> to vector<1x128xf32>
    %17 = arith.truncf %14 : vector<1x32xf32> to vector<1x32xbf16>
    %cst_9 = arith.constant dense<0.000000e+00> : vector<1x128xf32>
    %18 = tpu.matmul %17, %8, %cst_9 {dimension_numbers = #tpu.dot_dimension_numbers<[1], [0], [0], [1], [0, 0, 1, 1], [], []>} : vector<1x32xbf16>, vector<32x128xbf16>, vector<1x128xf32> -> vector<1x128xf32>
    %19 = arith.addf %16, %18 : vector<1x128xf32>
    %20 = math.tanh %19 : vector<1x128xf32>
    %21 = arith.negf %19 : vector<1x128xf32>
    %22 = math.exp %21 : vector<1x128xf32>
    %cst_10 = arith.constant 1.000000e+00 : f32
    %23 = vector.broadcast %cst_10 : f32 to vector<1x128xf32>
    %24 = arith.addf %23, %22 : vector<1x128xf32>
    %25 = arith.divf %23, %24 : vector<1x128xf32>
    %26 = arith.select %5, %20, %25 : vector<1x128xi1>, vector<1x128xf32>
    %27 = vector.extract_strided_slice %26 {offsets = [0, 0], sizes = [1, 32], strides = [1, 1]} : vector<1x128xf32> to vector<1x32xf32>
    %28 = vector.extract_strided_slice %26 {offsets = [0, 32], sizes = [1, 32], strides = [1, 1]} : vector<1x128xf32> to vector<1x32xf32>
    %29 = vector.extract_strided_slice %26 {offsets = [0, 64], sizes = [1, 32], strides = [1, 1]} : vector<1x128xf32> to vector<1x32xf32>
    %30 = vector.extract_strided_slice %26 {offsets = [0, 96], sizes = [1, 32], strides = [1, 1]} : vector<1x128xf32> to vector<1x32xf32>
    %31 = arith.mulf %28, %15 : vector<1x32xf32>
    %32 = arith.mulf %27, %29 : vector<1x32xf32>
    %33 = arith.addf %31, %32 : vector<1x32xf32>
    %34 = math.tanh %33 : vector<1x32xf32>
    %35 = arith.mulf %30, %34 : vector<1x32xf32>
    %36 = vector.extract_strided_slice %13 {offsets = [1, 0], sizes = [1, 128], strides = [1, 1]} : vector<8x128xf32> to vector<1x128xf32>
    %37 = arith.truncf %35 : vector<1x32xf32> to vector<1x32xbf16>
    %cst_11 = arith.constant dense<0.000000e+00> : vector<1x128xf32>
    %38 = tpu.matmul %37, %8, %cst_11 {dimension_numbers = #tpu.dot_dimension_numbers<[1], [0], [0], [1], [0, 0, 1, 1], [], []>} : vector<1x32xbf16>, vector<32x128xbf16>, vector<1x128xf32> -> vector<1x128xf32>
    %39 = arith.addf %36, %38 : vector<1x128xf32>
    %40 = math.tanh %39 : vector<1x128xf32>
    %41 = arith.negf %39 : vector<1x128xf32>
    %42 = math.exp %41 : vector<1x128xf32>
    %cst_12 = arith.constant 1.000000e+00 : f32
    %43 = vector.broadcast %cst_12 : f32 to vector<1x128xf32>
    %44 = arith.addf %43, %42 : vector<1x128xf32>
    %45 = arith.divf %43, %44 : vector<1x128xf32>
    %46 = arith.select %5, %40, %45 : vector<1x128xi1>, vector<1x128xf32>
    %47 = vector.extract_strided_slice %46 {offsets = [0, 0], sizes = [1, 32], strides = [1, 1]} : vector<1x128xf32> to vector<1x32xf32>
    %48 = vector.extract_strided_slice %46 {offsets = [0, 32], sizes = [1, 32], strides = [1, 1]} : vector<1x128xf32> to vector<1x32xf32>
    %49 = vector.extract_strided_slice %46 {offsets = [0, 64], sizes = [1, 32], strides = [1, 1]} : vector<1x128xf32> to vector<1x32xf32>
    %50 = vector.extract_strided_slice %46 {offsets = [0, 96], sizes = [1, 32], strides = [1, 1]} : vector<1x128xf32> to vector<1x32xf32>
    %51 = arith.mulf %48, %33 : vector<1x32xf32>
    %52 = arith.mulf %47, %49 : vector<1x32xf32>
    %53 = arith.addf %51, %52 : vector<1x32xf32>
    %54 = math.tanh %53 : vector<1x32xf32>
    %55 = arith.mulf %50, %54 : vector<1x32xf32>
    %56 = vector.extract_strided_slice %13 {offsets = [2, 0], sizes = [1, 128], strides = [1, 1]} : vector<8x128xf32> to vector<1x128xf32>
    %57 = arith.truncf %55 : vector<1x32xf32> to vector<1x32xbf16>
    %cst_13 = arith.constant dense<0.000000e+00> : vector<1x128xf32>
    %58 = tpu.matmul %57, %8, %cst_13 {dimension_numbers = #tpu.dot_dimension_numbers<[1], [0], [0], [1], [0, 0, 1, 1], [], []>} : vector<1x32xbf16>, vector<32x128xbf16>, vector<1x128xf32> -> vector<1x128xf32>
    %59 = arith.addf %56, %58 : vector<1x128xf32>
    %60 = math.tanh %59 : vector<1x128xf32>
    %61 = arith.negf %59 : vector<1x128xf32>
    %62 = math.exp %61 : vector<1x128xf32>
    %cst_14 = arith.constant 1.000000e+00 : f32
    %63 = vector.broadcast %cst_14 : f32 to vector<1x128xf32>
    %64 = arith.addf %63, %62 : vector<1x128xf32>
    %65 = arith.divf %63, %64 : vector<1x128xf32>
    %66 = arith.select %5, %60, %65 : vector<1x128xi1>, vector<1x128xf32>
    %67 = vector.extract_strided_slice %66 {offsets = [0, 0], sizes = [1, 32], strides = [1, 1]} : vector<1x128xf32> to vector<1x32xf32>
    %68 = vector.extract_strided_slice %66 {offsets = [0, 32], sizes = [1, 32], strides = [1, 1]} : vector<1x128xf32> to vector<1x32xf32>
    %69 = vector.extract_strided_slice %66 {offsets = [0, 64], sizes = [1, 32], strides = [1, 1]} : vector<1x128xf32> to vector<1x32xf32>
    %70 = vector.extract_strided_slice %66 {offsets = [0, 96], sizes = [1, 32], strides = [1, 1]} : vector<1x128xf32> to vector<1x32xf32>
    %71 = arith.mulf %68, %53 : vector<1x32xf32>
    %72 = arith.mulf %67, %69 : vector<1x32xf32>
    %73 = arith.addf %71, %72 : vector<1x32xf32>
    %74 = math.tanh %73 : vector<1x32xf32>
    %75 = arith.mulf %70, %74 : vector<1x32xf32>
    %76 = vector.extract_strided_slice %13 {offsets = [3, 0], sizes = [1, 128], strides = [1, 1]} : vector<8x128xf32> to vector<1x128xf32>
    %77 = arith.truncf %75 : vector<1x32xf32> to vector<1x32xbf16>
    %cst_15 = arith.constant dense<0.000000e+00> : vector<1x128xf32>
    %78 = tpu.matmul %77, %8, %cst_15 {dimension_numbers = #tpu.dot_dimension_numbers<[1], [0], [0], [1], [0, 0, 1, 1], [], []>} : vector<1x32xbf16>, vector<32x128xbf16>, vector<1x128xf32> -> vector<1x128xf32>
    %79 = arith.addf %76, %78 : vector<1x128xf32>
    %80 = math.tanh %79 : vector<1x128xf32>
    %81 = arith.negf %79 : vector<1x128xf32>
    %82 = math.exp %81 : vector<1x128xf32>
    %cst_16 = arith.constant 1.000000e+00 : f32
    %83 = vector.broadcast %cst_16 : f32 to vector<1x128xf32>
    %84 = arith.addf %83, %82 : vector<1x128xf32>
    %85 = arith.divf %83, %84 : vector<1x128xf32>
    %86 = arith.select %5, %80, %85 : vector<1x128xi1>, vector<1x128xf32>
    %87 = vector.extract_strided_slice %86 {offsets = [0, 0], sizes = [1, 32], strides = [1, 1]} : vector<1x128xf32> to vector<1x32xf32>
    %88 = vector.extract_strided_slice %86 {offsets = [0, 32], sizes = [1, 32], strides = [1, 1]} : vector<1x128xf32> to vector<1x32xf32>
    %89 = vector.extract_strided_slice %86 {offsets = [0, 64], sizes = [1, 32], strides = [1, 1]} : vector<1x128xf32> to vector<1x32xf32>
    %90 = vector.extract_strided_slice %86 {offsets = [0, 96], sizes = [1, 32], strides = [1, 1]} : vector<1x128xf32> to vector<1x32xf32>
    %91 = arith.mulf %88, %73 : vector<1x32xf32>
    %92 = arith.mulf %87, %89 : vector<1x32xf32>
    %93 = arith.addf %91, %92 : vector<1x32xf32>
    %94 = math.tanh %93 : vector<1x32xf32>
    %95 = arith.mulf %90, %94 : vector<1x32xf32>
    %96 = vector.extract_strided_slice %13 {offsets = [4, 0], sizes = [1, 128], strides = [1, 1]} : vector<8x128xf32> to vector<1x128xf32>
    %97 = arith.truncf %95 : vector<1x32xf32> to vector<1x32xbf16>
    %cst_17 = arith.constant dense<0.000000e+00> : vector<1x128xf32>
    %98 = tpu.matmul %97, %8, %cst_17 {dimension_numbers = #tpu.dot_dimension_numbers<[1], [0], [0], [1], [0, 0, 1, 1], [], []>} : vector<1x32xbf16>, vector<32x128xbf16>, vector<1x128xf32> -> vector<1x128xf32>
    %99 = arith.addf %96, %98 : vector<1x128xf32>
    %100 = math.tanh %99 : vector<1x128xf32>
    %101 = arith.negf %99 : vector<1x128xf32>
    %102 = math.exp %101 : vector<1x128xf32>
    %cst_18 = arith.constant 1.000000e+00 : f32
    %103 = vector.broadcast %cst_18 : f32 to vector<1x128xf32>
    %104 = arith.addf %103, %102 : vector<1x128xf32>
    %105 = arith.divf %103, %104 : vector<1x128xf32>
    %106 = arith.select %5, %100, %105 : vector<1x128xi1>, vector<1x128xf32>
    %107 = vector.extract_strided_slice %106 {offsets = [0, 0], sizes = [1, 32], strides = [1, 1]} : vector<1x128xf32> to vector<1x32xf32>
    %108 = vector.extract_strided_slice %106 {offsets = [0, 32], sizes = [1, 32], strides = [1, 1]} : vector<1x128xf32> to vector<1x32xf32>
    %109 = vector.extract_strided_slice %106 {offsets = [0, 64], sizes = [1, 32], strides = [1, 1]} : vector<1x128xf32> to vector<1x32xf32>
    %110 = vector.extract_strided_slice %106 {offsets = [0, 96], sizes = [1, 32], strides = [1, 1]} : vector<1x128xf32> to vector<1x32xf32>
    %111 = arith.mulf %108, %93 : vector<1x32xf32>
    %112 = arith.mulf %107, %109 : vector<1x32xf32>
    %113 = arith.addf %111, %112 : vector<1x32xf32>
    %114 = math.tanh %113 : vector<1x32xf32>
    %115 = arith.mulf %110, %114 : vector<1x32xf32>
    %116 = vector.extract_strided_slice %13 {offsets = [5, 0], sizes = [1, 128], strides = [1, 1]} : vector<8x128xf32> to vector<1x128xf32>
    %117 = arith.truncf %115 : vector<1x32xf32> to vector<1x32xbf16>
    %cst_19 = arith.constant dense<0.000000e+00> : vector<1x128xf32>
    %118 = tpu.matmul %117, %8, %cst_19 {dimension_numbers = #tpu.dot_dimension_numbers<[1], [0], [0], [1], [0, 0, 1, 1], [], []>} : vector<1x32xbf16>, vector<32x128xbf16>, vector<1x128xf32> -> vector<1x128xf32>
    %119 = arith.addf %116, %118 : vector<1x128xf32>
    %120 = math.tanh %119 : vector<1x128xf32>
    %121 = arith.negf %119 : vector<1x128xf32>
    %122 = math.exp %121 : vector<1x128xf32>
    %cst_20 = arith.constant 1.000000e+00 : f32
    %123 = vector.broadcast %cst_20 : f32 to vector<1x128xf32>
    %124 = arith.addf %123, %122 : vector<1x128xf32>
    %125 = arith.divf %123, %124 : vector<1x128xf32>
    %126 = arith.select %5, %120, %125 : vector<1x128xi1>, vector<1x128xf32>
    %127 = vector.extract_strided_slice %126 {offsets = [0, 0], sizes = [1, 32], strides = [1, 1]} : vector<1x128xf32> to vector<1x32xf32>
    %128 = vector.extract_strided_slice %126 {offsets = [0, 32], sizes = [1, 32], strides = [1, 1]} : vector<1x128xf32> to vector<1x32xf32>
    %129 = vector.extract_strided_slice %126 {offsets = [0, 64], sizes = [1, 32], strides = [1, 1]} : vector<1x128xf32> to vector<1x32xf32>
    %130 = vector.extract_strided_slice %126 {offsets = [0, 96], sizes = [1, 32], strides = [1, 1]} : vector<1x128xf32> to vector<1x32xf32>
    %131 = arith.mulf %128, %113 : vector<1x32xf32>
    %132 = arith.mulf %127, %129 : vector<1x32xf32>
    %133 = arith.addf %131, %132 : vector<1x32xf32>
    %134 = math.tanh %133 : vector<1x32xf32>
    %135 = arith.mulf %130, %134 : vector<1x32xf32>
    %136 = vector.extract_strided_slice %13 {offsets = [6, 0], sizes = [1, 128], strides = [1, 1]} : vector<8x128xf32> to vector<1x128xf32>
    %137 = arith.truncf %135 : vector<1x32xf32> to vector<1x32xbf16>
    %cst_21 = arith.constant dense<0.000000e+00> : vector<1x128xf32>
    %138 = tpu.matmul %137, %8, %cst_21 {dimension_numbers = #tpu.dot_dimension_numbers<[1], [0], [0], [1], [0, 0, 1, 1], [], []>} : vector<1x32xbf16>, vector<32x128xbf16>, vector<1x128xf32> -> vector<1x128xf32>
    %139 = arith.addf %136, %138 : vector<1x128xf32>
    %140 = math.tanh %139 : vector<1x128xf32>
    %141 = arith.negf %139 : vector<1x128xf32>
    %142 = math.exp %141 : vector<1x128xf32>
    %cst_22 = arith.constant 1.000000e+00 : f32
    %143 = vector.broadcast %cst_22 : f32 to vector<1x128xf32>
    %144 = arith.addf %143, %142 : vector<1x128xf32>
    %145 = arith.divf %143, %144 : vector<1x128xf32>
    %146 = arith.select %5, %140, %145 : vector<1x128xi1>, vector<1x128xf32>
    %147 = vector.extract_strided_slice %146 {offsets = [0, 0], sizes = [1, 32], strides = [1, 1]} : vector<1x128xf32> to vector<1x32xf32>
    %148 = vector.extract_strided_slice %146 {offsets = [0, 32], sizes = [1, 32], strides = [1, 1]} : vector<1x128xf32> to vector<1x32xf32>
    %149 = vector.extract_strided_slice %146 {offsets = [0, 64], sizes = [1, 32], strides = [1, 1]} : vector<1x128xf32> to vector<1x32xf32>
    %150 = vector.extract_strided_slice %146 {offsets = [0, 96], sizes = [1, 32], strides = [1, 1]} : vector<1x128xf32> to vector<1x32xf32>
    %151 = arith.mulf %148, %133 : vector<1x32xf32>
    %152 = arith.mulf %147, %149 : vector<1x32xf32>
    %153 = arith.addf %151, %152 : vector<1x32xf32>
    %154 = math.tanh %153 : vector<1x32xf32>
    %155 = arith.mulf %150, %154 : vector<1x32xf32>
    %156 = vector.extract_strided_slice %13 {offsets = [7, 0], sizes = [1, 128], strides = [1, 1]} : vector<8x128xf32> to vector<1x128xf32>
    %157 = arith.truncf %155 : vector<1x32xf32> to vector<1x32xbf16>
    %cst_23 = arith.constant dense<0.000000e+00> : vector<1x128xf32>
    %158 = tpu.matmul %157, %8, %cst_23 {dimension_numbers = #tpu.dot_dimension_numbers<[1], [0], [0], [1], [0, 0, 1, 1], [], []>} : vector<1x32xbf16>, vector<32x128xbf16>, vector<1x128xf32> -> vector<1x128xf32>
    %159 = arith.addf %156, %158 : vector<1x128xf32>
    %160 = math.tanh %159 : vector<1x128xf32>
    %161 = arith.negf %159 : vector<1x128xf32>
    %162 = math.exp %161 : vector<1x128xf32>
    %cst_24 = arith.constant 1.000000e+00 : f32
    %163 = vector.broadcast %cst_24 : f32 to vector<1x128xf32>
    %164 = arith.addf %163, %162 : vector<1x128xf32>
    %165 = arith.divf %163, %164 : vector<1x128xf32>
    %166 = arith.select %5, %160, %165 : vector<1x128xi1>, vector<1x128xf32>
    %167 = vector.extract_strided_slice %166 {offsets = [0, 0], sizes = [1, 32], strides = [1, 1]} : vector<1x128xf32> to vector<1x32xf32>
    %168 = vector.extract_strided_slice %166 {offsets = [0, 32], sizes = [1, 32], strides = [1, 1]} : vector<1x128xf32> to vector<1x32xf32>
    %169 = vector.extract_strided_slice %166 {offsets = [0, 64], sizes = [1, 32], strides = [1, 1]} : vector<1x128xf32> to vector<1x32xf32>
    %170 = vector.extract_strided_slice %166 {offsets = [0, 96], sizes = [1, 32], strides = [1, 1]} : vector<1x128xf32> to vector<1x32xf32>
    %171 = arith.mulf %168, %153 : vector<1x32xf32>
    %172 = arith.mulf %167, %169 : vector<1x32xf32>
    %173 = arith.addf %171, %172 : vector<1x32xf32>
    %174 = math.tanh %173 : vector<1x32xf32>
    %175 = arith.mulf %170, %174 : vector<1x32xf32>
    %176 = tpu.concatenate %35, %55, %75, %95, %115, %135, %155, %175 in 0 : vector<1x32xf32>, vector<1x32xf32>, vector<1x32xf32>, vector<1x32xf32>, vector<1x32xf32>, vector<1x32xf32>, vector<1x32xf32>, vector<1x32xf32> -> vector<8x32xf32>
    %c0_25 = arith.constant 0 : index
    %c0_26 = arith.constant 0 : index
    %177 = vector.load %arg4[%c0_25, %c0_26] : memref<32x128xbf16, #tpu.memory_space<vmem>>, vector<32x128xbf16>
    %c0_27 = arith.constant 0 : index
    %c0_28 = arith.constant 0 : index
    %178 = vector.load %arg5[%c0_27, %c0_28] : memref<32x128xbf16, #tpu.memory_space<vmem>>, vector<32x128xbf16>
    %c0_29 = arith.constant 0 : index
    %c0_30 = arith.constant 0 : index
    %179 = vector.load %arg6[%c0_29, %c0_30] : memref<1x128xf32, #tpu.memory_space<vmem>>, vector<1x128xf32>
    %180 = arith.truncf %176 : vector<8x32xf32> to vector<8x32xbf16>
    %cst_31 = arith.constant dense<0.000000e+00> : vector<8x128xf32>
    %181 = tpu.matmul %180, %177, %cst_31 {dimension_numbers = #tpu.dot_dimension_numbers<[1], [0], [0], [1], [0, 0, 1, 1], [], []>} : vector<8x32xbf16>, vector<32x128xbf16>, vector<8x128xf32> -> vector<8x128xf32>
    %182 = vector.broadcast %179 : vector<1x128xf32> to vector<8x128xf32>
    %183 = arith.addf %181, %182 : vector<8x128xf32>
    %cst_32 = arith.constant 0.000000e+00 : f32
    %184 = vector.broadcast %cst_32 : f32 to vector<1x32xf32>
    %cst_33 = arith.constant 0.000000e+00 : f32
    %185 = vector.broadcast %cst_33 : f32 to vector<1x32xf32>
    %186 = vector.extract_strided_slice %183 {offsets = [0, 0], sizes = [1, 128], strides = [1, 1]} : vector<8x128xf32> to vector<1x128xf32>
    %187 = arith.truncf %184 : vector<1x32xf32> to vector<1x32xbf16>
    %cst_34 = arith.constant dense<0.000000e+00> : vector<1x128xf32>
    %188 = tpu.matmul %187, %178, %cst_34 {dimension_numbers = #tpu.dot_dimension_numbers<[1], [0], [0], [1], [0, 0, 1, 1], [], []>} : vector<1x32xbf16>, vector<32x128xbf16>, vector<1x128xf32> -> vector<1x128xf32>
    %189 = arith.addf %186, %188 : vector<1x128xf32>
    %190 = math.tanh %189 : vector<1x128xf32>
    %191 = arith.negf %189 : vector<1x128xf32>
    %192 = math.exp %191 : vector<1x128xf32>
    %cst_35 = arith.constant 1.000000e+00 : f32
    %193 = vector.broadcast %cst_35 : f32 to vector<1x128xf32>
    %194 = arith.addf %193, %192 : vector<1x128xf32>
    %195 = arith.divf %193, %194 : vector<1x128xf32>
    %196 = arith.select %5, %190, %195 : vector<1x128xi1>, vector<1x128xf32>
    %197 = vector.extract_strided_slice %196 {offsets = [0, 0], sizes = [1, 32], strides = [1, 1]} : vector<1x128xf32> to vector<1x32xf32>
    %198 = vector.extract_strided_slice %196 {offsets = [0, 32], sizes = [1, 32], strides = [1, 1]} : vector<1x128xf32> to vector<1x32xf32>
    %199 = vector.extract_strided_slice %196 {offsets = [0, 64], sizes = [1, 32], strides = [1, 1]} : vector<1x128xf32> to vector<1x32xf32>
    %200 = vector.extract_strided_slice %196 {offsets = [0, 96], sizes = [1, 32], strides = [1, 1]} : vector<1x128xf32> to vector<1x32xf32>
    %201 = arith.mulf %198, %185 : vector<1x32xf32>
    %202 = arith.mulf %197, %199 : vector<1x32xf32>
    %203 = arith.addf %201, %202 : vector<1x32xf32>
    %204 = math.tanh %203 : vector<1x32xf32>
    %205 = arith.mulf %200, %204 : vector<1x32xf32>
    %206 = vector.extract_strided_slice %183 {offsets = [1, 0], sizes = [1, 128], strides = [1, 1]} : vector<8x128xf32> to vector<1x128xf32>
    %207 = arith.truncf %205 : vector<1x32xf32> to vector<1x32xbf16>
    %cst_36 = arith.constant dense<0.000000e+00> : vector<1x128xf32>
    %208 = tpu.matmul %207, %178, %cst_36 {dimension_numbers = #tpu.dot_dimension_numbers<[1], [0], [0], [1], [0, 0, 1, 1], [], []>} : vector<1x32xbf16>, vector<32x128xbf16>, vector<1x128xf32> -> vector<1x128xf32>
    %209 = arith.addf %206, %208 : vector<1x128xf32>
    %210 = math.tanh %209 : vector<1x128xf32>
    %211 = arith.negf %209 : vector<1x128xf32>
    %212 = math.exp %211 : vector<1x128xf32>
    %cst_37 = arith.constant 1.000000e+00 : f32
    %213 = vector.broadcast %cst_37 : f32 to vector<1x128xf32>
    %214 = arith.addf %213, %212 : vector<1x128xf32>
    %215 = arith.divf %213, %214 : vector<1x128xf32>
    %216 = arith.select %5, %210, %215 : vector<1x128xi1>, vector<1x128xf32>
    %217 = vector.extract_strided_slice %216 {offsets = [0, 0], sizes = [1, 32], strides = [1, 1]} : vector<1x128xf32> to vector<1x32xf32>
    %218 = vector.extract_strided_slice %216 {offsets = [0, 32], sizes = [1, 32], strides = [1, 1]} : vector<1x128xf32> to vector<1x32xf32>
    %219 = vector.extract_strided_slice %216 {offsets = [0, 64], sizes = [1, 32], strides = [1, 1]} : vector<1x128xf32> to vector<1x32xf32>
    %220 = vector.extract_strided_slice %216 {offsets = [0, 96], sizes = [1, 32], strides = [1, 1]} : vector<1x128xf32> to vector<1x32xf32>
    %221 = arith.mulf %218, %203 : vector<1x32xf32>
    %222 = arith.mulf %217, %219 : vector<1x32xf32>
    %223 = arith.addf %221, %222 : vector<1x32xf32>
    %224 = math.tanh %223 : vector<1x32xf32>
    %225 = arith.mulf %220, %224 : vector<1x32xf32>
    %226 = vector.extract_strided_slice %183 {offsets = [2, 0], sizes = [1, 128], strides = [1, 1]} : vector<8x128xf32> to vector<1x128xf32>
    %227 = arith.truncf %225 : vector<1x32xf32> to vector<1x32xbf16>
    %cst_38 = arith.constant dense<0.000000e+00> : vector<1x128xf32>
    %228 = tpu.matmul %227, %178, %cst_38 {dimension_numbers = #tpu.dot_dimension_numbers<[1], [0], [0], [1], [0, 0, 1, 1], [], []>} : vector<1x32xbf16>, vector<32x128xbf16>, vector<1x128xf32> -> vector<1x128xf32>
    %229 = arith.addf %226, %228 : vector<1x128xf32>
    %230 = math.tanh %229 : vector<1x128xf32>
    %231 = arith.negf %229 : vector<1x128xf32>
    %232 = math.exp %231 : vector<1x128xf32>
    %cst_39 = arith.constant 1.000000e+00 : f32
    %233 = vector.broadcast %cst_39 : f32 to vector<1x128xf32>
    %234 = arith.addf %233, %232 : vector<1x128xf32>
    %235 = arith.divf %233, %234 : vector<1x128xf32>
    %236 = arith.select %5, %230, %235 : vector<1x128xi1>, vector<1x128xf32>
    %237 = vector.extract_strided_slice %236 {offsets = [0, 0], sizes = [1, 32], strides = [1, 1]} : vector<1x128xf32> to vector<1x32xf32>
    %238 = vector.extract_strided_slice %236 {offsets = [0, 32], sizes = [1, 32], strides = [1, 1]} : vector<1x128xf32> to vector<1x32xf32>
    %239 = vector.extract_strided_slice %236 {offsets = [0, 64], sizes = [1, 32], strides = [1, 1]} : vector<1x128xf32> to vector<1x32xf32>
    %240 = vector.extract_strided_slice %236 {offsets = [0, 96], sizes = [1, 32], strides = [1, 1]} : vector<1x128xf32> to vector<1x32xf32>
    %241 = arith.mulf %238, %223 : vector<1x32xf32>
    %242 = arith.mulf %237, %239 : vector<1x32xf32>
    %243 = arith.addf %241, %242 : vector<1x32xf32>
    %244 = math.tanh %243 : vector<1x32xf32>
    %245 = arith.mulf %240, %244 : vector<1x32xf32>
    %246 = vector.extract_strided_slice %183 {offsets = [3, 0], sizes = [1, 128], strides = [1, 1]} : vector<8x128xf32> to vector<1x128xf32>
    %247 = arith.truncf %245 : vector<1x32xf32> to vector<1x32xbf16>
    %cst_40 = arith.constant dense<0.000000e+00> : vector<1x128xf32>
    %248 = tpu.matmul %247, %178, %cst_40 {dimension_numbers = #tpu.dot_dimension_numbers<[1], [0], [0], [1], [0, 0, 1, 1], [], []>} : vector<1x32xbf16>, vector<32x128xbf16>, vector<1x128xf32> -> vector<1x128xf32>
    %249 = arith.addf %246, %248 : vector<1x128xf32>
    %250 = math.tanh %249 : vector<1x128xf32>
    %251 = arith.negf %249 : vector<1x128xf32>
    %252 = math.exp %251 : vector<1x128xf32>
    %cst_41 = arith.constant 1.000000e+00 : f32
    %253 = vector.broadcast %cst_41 : f32 to vector<1x128xf32>
    %254 = arith.addf %253, %252 : vector<1x128xf32>
    %255 = arith.divf %253, %254 : vector<1x128xf32>
    %256 = arith.select %5, %250, %255 : vector<1x128xi1>, vector<1x128xf32>
    %257 = vector.extract_strided_slice %256 {offsets = [0, 0], sizes = [1, 32], strides = [1, 1]} : vector<1x128xf32> to vector<1x32xf32>
    %258 = vector.extract_strided_slice %256 {offsets = [0, 32], sizes = [1, 32], strides = [1, 1]} : vector<1x128xf32> to vector<1x32xf32>
    %259 = vector.extract_strided_slice %256 {offsets = [0, 64], sizes = [1, 32], strides = [1, 1]} : vector<1x128xf32> to vector<1x32xf32>
    %260 = vector.extract_strided_slice %256 {offsets = [0, 96], sizes = [1, 32], strides = [1, 1]} : vector<1x128xf32> to vector<1x32xf32>
    %261 = arith.mulf %258, %243 : vector<1x32xf32>
    %262 = arith.mulf %257, %259 : vector<1x32xf32>
    %263 = arith.addf %261, %262 : vector<1x32xf32>
    %264 = math.tanh %263 : vector<1x32xf32>
    %265 = arith.mulf %260, %264 : vector<1x32xf32>
    %266 = vector.extract_strided_slice %183 {offsets = [4, 0], sizes = [1, 128], strides = [1, 1]} : vector<8x128xf32> to vector<1x128xf32>
    %267 = arith.truncf %265 : vector<1x32xf32> to vector<1x32xbf16>
    %cst_42 = arith.constant dense<0.000000e+00> : vector<1x128xf32>
    %268 = tpu.matmul %267, %178, %cst_42 {dimension_numbers = #tpu.dot_dimension_numbers<[1], [0], [0], [1], [0, 0, 1, 1], [], []>} : vector<1x32xbf16>, vector<32x128xbf16>, vector<1x128xf32> -> vector<1x128xf32>
    %269 = arith.addf %266, %268 : vector<1x128xf32>
    %270 = math.tanh %269 : vector<1x128xf32>
    %271 = arith.negf %269 : vector<1x128xf32>
    %272 = math.exp %271 : vector<1x128xf32>
    %cst_43 = arith.constant 1.000000e+00 : f32
    %273 = vector.broadcast %cst_43 : f32 to vector<1x128xf32>
    %274 = arith.addf %273, %272 : vector<1x128xf32>
    %275 = arith.divf %273, %274 : vector<1x128xf32>
    %276 = arith.select %5, %270, %275 : vector<1x128xi1>, vector<1x128xf32>
    %277 = vector.extract_strided_slice %276 {offsets = [0, 0], sizes = [1, 32], strides = [1, 1]} : vector<1x128xf32> to vector<1x32xf32>
    %278 = vector.extract_strided_slice %276 {offsets = [0, 32], sizes = [1, 32], strides = [1, 1]} : vector<1x128xf32> to vector<1x32xf32>
    %279 = vector.extract_strided_slice %276 {offsets = [0, 64], sizes = [1, 32], strides = [1, 1]} : vector<1x128xf32> to vector<1x32xf32>
    %280 = vector.extract_strided_slice %276 {offsets = [0, 96], sizes = [1, 32], strides = [1, 1]} : vector<1x128xf32> to vector<1x32xf32>
    %281 = arith.mulf %278, %263 : vector<1x32xf32>
    %282 = arith.mulf %277, %279 : vector<1x32xf32>
    %283 = arith.addf %281, %282 : vector<1x32xf32>
    %284 = math.tanh %283 : vector<1x32xf32>
    %285 = arith.mulf %280, %284 : vector<1x32xf32>
    %286 = vector.extract_strided_slice %183 {offsets = [5, 0], sizes = [1, 128], strides = [1, 1]} : vector<8x128xf32> to vector<1x128xf32>
    %287 = arith.truncf %285 : vector<1x32xf32> to vector<1x32xbf16>
    %cst_44 = arith.constant dense<0.000000e+00> : vector<1x128xf32>
    %288 = tpu.matmul %287, %178, %cst_44 {dimension_numbers = #tpu.dot_dimension_numbers<[1], [0], [0], [1], [0, 0, 1, 1], [], []>} : vector<1x32xbf16>, vector<32x128xbf16>, vector<1x128xf32> -> vector<1x128xf32>
    %289 = arith.addf %286, %288 : vector<1x128xf32>
    %290 = math.tanh %289 : vector<1x128xf32>
    %291 = arith.negf %289 : vector<1x128xf32>
    %292 = math.exp %291 : vector<1x128xf32>
    %cst_45 = arith.constant 1.000000e+00 : f32
    %293 = vector.broadcast %cst_45 : f32 to vector<1x128xf32>
    %294 = arith.addf %293, %292 : vector<1x128xf32>
    %295 = arith.divf %293, %294 : vector<1x128xf32>
    %296 = arith.select %5, %290, %295 : vector<1x128xi1>, vector<1x128xf32>
    %297 = vector.extract_strided_slice %296 {offsets = [0, 0], sizes = [1, 32], strides = [1, 1]} : vector<1x128xf32> to vector<1x32xf32>
    %298 = vector.extract_strided_slice %296 {offsets = [0, 32], sizes = [1, 32], strides = [1, 1]} : vector<1x128xf32> to vector<1x32xf32>
    %299 = vector.extract_strided_slice %296 {offsets = [0, 64], sizes = [1, 32], strides = [1, 1]} : vector<1x128xf32> to vector<1x32xf32>
    %300 = vector.extract_strided_slice %296 {offsets = [0, 96], sizes = [1, 32], strides = [1, 1]} : vector<1x128xf32> to vector<1x32xf32>
    %301 = arith.mulf %298, %283 : vector<1x32xf32>
    %302 = arith.mulf %297, %299 : vector<1x32xf32>
    %303 = arith.addf %301, %302 : vector<1x32xf32>
    %304 = math.tanh %303 : vector<1x32xf32>
    %305 = arith.mulf %300, %304 : vector<1x32xf32>
    %306 = vector.extract_strided_slice %183 {offsets = [6, 0], sizes = [1, 128], strides = [1, 1]} : vector<8x128xf32> to vector<1x128xf32>
    %307 = arith.truncf %305 : vector<1x32xf32> to vector<1x32xbf16>
    %cst_46 = arith.constant dense<0.000000e+00> : vector<1x128xf32>
    %308 = tpu.matmul %307, %178, %cst_46 {dimension_numbers = #tpu.dot_dimension_numbers<[1], [0], [0], [1], [0, 0, 1, 1], [], []>} : vector<1x32xbf16>, vector<32x128xbf16>, vector<1x128xf32> -> vector<1x128xf32>
    %309 = arith.addf %306, %308 : vector<1x128xf32>
    %310 = math.tanh %309 : vector<1x128xf32>
    %311 = arith.negf %309 : vector<1x128xf32>
    %312 = math.exp %311 : vector<1x128xf32>
    %cst_47 = arith.constant 1.000000e+00 : f32
    %313 = vector.broadcast %cst_47 : f32 to vector<1x128xf32>
    %314 = arith.addf %313, %312 : vector<1x128xf32>
    %315 = arith.divf %313, %314 : vector<1x128xf32>
    %316 = arith.select %5, %310, %315 : vector<1x128xi1>, vector<1x128xf32>
    %317 = vector.extract_strided_slice %316 {offsets = [0, 0], sizes = [1, 32], strides = [1, 1]} : vector<1x128xf32> to vector<1x32xf32>
    %318 = vector.extract_strided_slice %316 {offsets = [0, 32], sizes = [1, 32], strides = [1, 1]} : vector<1x128xf32> to vector<1x32xf32>
    %319 = vector.extract_strided_slice %316 {offsets = [0, 64], sizes = [1, 32], strides = [1, 1]} : vector<1x128xf32> to vector<1x32xf32>
    %320 = vector.extract_strided_slice %316 {offsets = [0, 96], sizes = [1, 32], strides = [1, 1]} : vector<1x128xf32> to vector<1x32xf32>
    %321 = arith.mulf %318, %303 : vector<1x32xf32>
    %322 = arith.mulf %317, %319 : vector<1x32xf32>
    %323 = arith.addf %321, %322 : vector<1x32xf32>
    %324 = math.tanh %323 : vector<1x32xf32>
    %325 = arith.mulf %320, %324 : vector<1x32xf32>
    %326 = vector.extract_strided_slice %183 {offsets = [7, 0], sizes = [1, 128], strides = [1, 1]} : vector<8x128xf32> to vector<1x128xf32>
    %327 = arith.truncf %325 : vector<1x32xf32> to vector<1x32xbf16>
    %cst_48 = arith.constant dense<0.000000e+00> : vector<1x128xf32>
    %328 = tpu.matmul %327, %178, %cst_48 {dimension_numbers = #tpu.dot_dimension_numbers<[1], [0], [0], [1], [0, 0, 1, 1], [], []>} : vector<1x32xbf16>, vector<32x128xbf16>, vector<1x128xf32> -> vector<1x128xf32>
    %329 = arith.addf %326, %328 : vector<1x128xf32>
    %330 = math.tanh %329 : vector<1x128xf32>
    %331 = arith.negf %329 : vector<1x128xf32>
    %332 = math.exp %331 : vector<1x128xf32>
    %cst_49 = arith.constant 1.000000e+00 : f32
    %333 = vector.broadcast %cst_49 : f32 to vector<1x128xf32>
    %334 = arith.addf %333, %332 : vector<1x128xf32>
    %335 = arith.divf %333, %334 : vector<1x128xf32>
    %336 = arith.select %5, %330, %335 : vector<1x128xi1>, vector<1x128xf32>
    %337 = vector.extract_strided_slice %336 {offsets = [0, 0], sizes = [1, 32], strides = [1, 1]} : vector<1x128xf32> to vector<1x32xf32>
    %338 = vector.extract_strided_slice %336 {offsets = [0, 32], sizes = [1, 32], strides = [1, 1]} : vector<1x128xf32> to vector<1x32xf32>
    %339 = vector.extract_strided_slice %336 {offsets = [0, 64], sizes = [1, 32], strides = [1, 1]} : vector<1x128xf32> to vector<1x32xf32>
    %340 = vector.extract_strided_slice %336 {offsets = [0, 96], sizes = [1, 32], strides = [1, 1]} : vector<1x128xf32> to vector<1x32xf32>
    %341 = arith.mulf %338, %323 : vector<1x32xf32>
    %342 = arith.mulf %337, %339 : vector<1x32xf32>
    %343 = arith.addf %341, %342 : vector<1x32xf32>
    %344 = math.tanh %343 : vector<1x32xf32>
    %345 = arith.mulf %340, %344 : vector<1x32xf32>
    %346 = tpu.concatenate %205, %225, %245, %265, %285, %305, %325, %345 in 0 : vector<1x32xf32>, vector<1x32xf32>, vector<1x32xf32>, vector<1x32xf32>, vector<1x32xf32>, vector<1x32xf32>, vector<1x32xf32>, vector<1x32xf32> -> vector<8x32xf32>
    %c0_50 = arith.constant 0 : index
    %c0_51 = arith.constant 0 : index
    %347 = vector.load %arg7[%c0_50, %c0_51] : memref<32x32xbf16, #tpu.memory_space<vmem>>, vector<32x32xbf16>
    %c0_52 = arith.constant 0 : index
    %c0_53 = arith.constant 0 : index
    %348 = vector.load %arg8[%c0_52, %c0_53] : memref<1x32xf32, #tpu.memory_space<vmem>>, vector<1x32xf32>
    %349 = arith.truncf %346 : vector<8x32xf32> to vector<8x32xbf16>
    %cst_54 = arith.constant dense<0.000000e+00> : vector<8x32xf32>
    %350 = tpu.matmul %349, %347, %cst_54 {dimension_numbers = #tpu.dot_dimension_numbers<[1], [0], [0], [1], [0, 0, 1, 1], [], []>} : vector<8x32xbf16>, vector<32x32xbf16>, vector<8x32xf32> -> vector<8x32xf32>
    %351 = vector.broadcast %348 : vector<1x32xf32> to vector<8x32xf32>
    %352 = arith.addf %350, %351 : vector<8x32xf32>
    %353 = math.tanh %352 : vector<8x32xf32>
    %c0_55 = arith.constant 0 : index
    %c0_56 = arith.constant 0 : index
    %354 = vector.load %arg9[%c0_55, %c0_56] : memref<32x32xbf16, #tpu.memory_space<vmem>>, vector<32x32xbf16>
    %c0_57 = arith.constant 0 : index
    %c0_58 = arith.constant 0 : index
    %355 = vector.load %arg10[%c0_57, %c0_58] : memref<1x32xf32, #tpu.memory_space<vmem>>, vector<1x32xf32>
    %356 = arith.truncf %353 : vector<8x32xf32> to vector<8x32xbf16>
    %cst_59 = arith.constant dense<0.000000e+00> : vector<8x32xf32>
    %357 = tpu.matmul %356, %354, %cst_59 {dimension_numbers = #tpu.dot_dimension_numbers<[1], [0], [0], [1], [0, 0, 1, 1], [], []>} : vector<8x32xbf16>, vector<32x32xbf16>, vector<8x32xf32> -> vector<8x32xf32>
    %358 = vector.broadcast %355 : vector<1x32xf32> to vector<8x32xf32>
    %359 = arith.addf %357, %358 : vector<8x32xf32>
    %360 = math.tanh %359 : vector<8x32xf32>
    %361 = arith.truncf %360 : vector<8x32xf32> to vector<8x32xbf16>
    %c0_60 = arith.constant 0 : index
    %c0_61 = arith.constant 0 : index
    %362 = vector.load %arg11[%c0_60, %c0_61] : memref<32x5xbf16, #tpu.memory_space<vmem>>, vector<32x5xbf16>
    %cst_62 = arith.constant dense<0.000000e+00> : vector<8x5xf32>
    %363 = tpu.matmul %361, %362, %cst_62 {dimension_numbers = #tpu.dot_dimension_numbers<[1], [0], [0], [1], [0, 0, 1, 1], [], []>} : vector<8x32xbf16>, vector<32x5xbf16>, vector<8x5xf32> -> vector<8x5xf32>
    %c0_63 = arith.constant 0 : index
    %c0_64 = arith.constant 0 : index
    %364 = vector.load %arg12[%c0_63, %c0_64] : memref<1x5xf32, #tpu.memory_space<vmem>>, vector<1x5xf32>
    %365 = vector.broadcast %364 : vector<1x5xf32> to vector<8x5xf32>
    %366 = arith.addf %363, %365 : vector<8x5xf32>
    %cst_65 = arith.constant dense<0xFF800000> : vector<8xf32>
    %367 = vector.multi_reduction <maximumf>, %366, %cst_65 [1] : vector<8x5xf32> to vector<8xf32>
    %368 = vector.shape_cast %367 : vector<8xf32> to vector<8x1xf32>
    %369 = vector.broadcast %368 : vector<8x1xf32> to vector<8x5xf32>
    %370 = arith.subf %366, %369 : vector<8x5xf32>
    %371 = math.exp %370 : vector<8x5xf32>
    %cst_66 = arith.constant dense<0.000000e+00> : vector<8xf32>
    %372 = vector.multi_reduction <add>, %371, %cst_66 [1] : vector<8x5xf32> to vector<8xf32>
    %373 = vector.shape_cast %372 : vector<8xf32> to vector<8x1xf32>
    %374 = vector.broadcast %373 : vector<8x1xf32> to vector<8x5xf32>
    %375 = arith.divf %371, %374 : vector<8x5xf32>
    %c0_67 = arith.constant 0 : index
    %c0_68 = arith.constant 0 : index
    %376 = vector.load %arg13[%c0_67, %c0_68] : memref<8x5xf32, #tpu.memory_space<vmem>>, vector<8x5xf32>
    tpu.vector_store %arg13[%c0_67, %c0_68], %375 {strides = array<i32>} : memref<8x5xf32, #tpu.memory_space<vmem>>, vector<8x5xf32>,
    return
  }
}

</mosaic_0001>

<llo_original>
// kernel: tpu_custom_call.1
$region0: #{tpu_custom_call.1}
  #allocation0 [shape = 'u32[]', space=smem, size = 0x4, offset = 0x4, fixed_abs, tag = 'smem constant byte address 0x4 - core index']
  #allocation1 [shape = 'u32[144,128]{1,0:T(1,128)}', space=vmem, size = 0x12000, scoped, tag = 'internal scratch']
  %s0 = inlined_call_operand.hbm [shape: f32[8,16], index: 0, kind: input, shape index: {}]
  %s1 = inlined_call_operand.hbm [shape: bf16[16,128], index: 1, kind: input, shape index: {}]
  %s2 = inlined_call_operand.vmem [shape: bf16[32,128], index: 2, kind: input, shape index: {}]
  %s3 = inlined_call_operand.hbm [shape: f32[1,128], index: 3, kind: input, shape index: {}]
  %s4 = inlined_call_operand.hbm [shape: bf16[32,128], index: 4, kind: input, shape index: {}]
  %s5 = inlined_call_operand.hbm [shape: bf16[32,128], index: 5, kind: input, shape index: {}]
  %s6 = inlined_call_operand.hbm [shape: f32[1,128], index: 6, kind: input, shape index: {}]
  %s7 = inlined_call_operand.vmem [shape: bf16[32,32], index: 7, kind: input, shape index: {}]
  %s8 = inlined_call_operand.hbm [shape: f32[1,32], index: 8, kind: input, shape index: {}]
  %s9 = inlined_call_operand.hbm [shape: bf16[32,32], index: 9, kind: input, shape index: {}]
  %s10 = inlined_call_operand.vmem [shape: f32[1,32], index: 10, kind: input, shape index: {}]
  %s11 = inlined_call_operand.vmem [shape: bf16[32,5], index: 11, kind: input, shape index: {}]
  %s12 = inlined_call_operand.vmem [shape: f32[1,5], index: 12, kind: input, shape index: {}]
  %s13 = inlined_call_operand.hbm [shape: f32[8,5], index: 13, kind: output, shape index: {}]
  %s14 = sld [smem:[#allocation0]]
  $region94: #{tpu_custom_call.1} parent=0
    _
  %s16 = ssub.s32 1, %s14
  %s17 = scalar_select 0, %s16, %s14
  $region1: #{tpu_custom_call.1} parent=0
    #allocation2 [shape = 'u8[4096]{0}', space=vmem, size = 0x1000, scoped, tag = 'input window, operand 0, single buffered']
    #allocation3 [shape = 's32[1]{0}', space=sflag, size = 0x4, scoped, tag = 'scoped memory for tpu_custom_call.1']
    #allocation4 [shape = 's32[1]{0}', space=sflag, size = 0x4, scoped, tag = 'scoped memory for tpu_custom_call.1']
    #allocation5 [shape = 'u8[4096]{0}', space=vmem, size = 0x1000, scoped, tag = 'input window, operand 1, single buffered']
    #allocation6 [shape = 's32[1]{0}', space=sflag, size = 0x4, scoped, tag = 'scoped memory for tpu_custom_call.1']
    #allocation7 [shape = 'u8[512]{0}', space=vmem, size = 0x400, scoped, tag = 'input window, operand 3, single buffered']
    #allocation8 [shape = 'u8[8192]{0}', space=vmem, size = 0x2000, scoped, tag = 'input window, operand 4, single buffered']
    #allocation9 [shape = 's32[1]{0}', space=sflag, size = 0x4, scoped, tag = 'scoped memory for tpu_custom_call.1']
    #allocation10 [shape = 'u8[8192]{0}', space=vmem, size = 0x2000, scoped, tag = 'input window, operand 5, single buffered']
    #allocation11 [shape = 'u8[512]{0}', space=vmem, size = 0x400, scoped, tag = 'input window, operand 6, single buffered']
    #allocation12 [shape = 's32[1]{0}', space=sflag, size = 0x4, scoped, tag = 'scoped memory for tpu_custom_call.1']
    #allocation13 [shape = 'u8[512]{0}', space=vmem, size = 0x400, scoped, tag = 'input window, operand 8, single buffered']
    #allocation14 [shape = 'u8[8192]{0}', space=vmem, size = 0x2000, scoped, tag = 'input window, operand 9, single buffered']
    #allocation15 [shape = 's32[1]{0}', space=sflag, size = 0x4, scoped, tag = 'scoped memory for tpu_custom_call.1']
    #allocation16 [shape = 'u8[4096]{0}', space=vmem, size = 0x1000, scoped, tag = 'output window, operand 0, single buffered']
    %18 = vsyncpa [#allocation3], 0
    %19 = vsyncpa [#allocation6], 0
    %20 = vsyncpa [#allocation9], 0
    %21 = vsyncpa [#allocation12], 0
    %22 = vsyncpa [#allocation15], 0
    %23 = vsyncpa [#allocation4], 0
    // Predicated region
    $region2: #{tpu_custom_call.1} parent=1 // pred_check
      _
    $region3: #{tpu_custom_call.1} parent=1 // pred_check_branch
      %25 = sbr.rel (0) target = $region5
    $region4: #{tpu_custom_call.1} parent=1 // pred_region
      %s27 = ssub.s32 128, 128
      %28 = vsyncadd [#allocation3], %s27
      %s30 = sshll.u32 [#allocation2], 4
      %s31 = int_to_ptr.vmem [resolvable:$true] %s30
      %33 = dma.hbm_to_vmem [thread:$0]  %s0, 128, %s31, [#allocation3]
    $region5: #{tpu_custom_call.1} parent=1 // pred_fallthru
      _
    // Predicated region
    $region6: #{tpu_custom_call.1} parent=1 // pred_check
      _
    $region7: #{tpu_custom_call.1} parent=1 // pred_check_branch
      %35 = sbr.rel (0) target = $region9
    $region8: #{tpu_custom_call.1} parent=1 // pred_region
      %s37 = ssub.s32 128, 128
      %38 = vsyncadd [#allocation6], %s37
      %s39 = sshll.u32 [#allocation5], 4
      %s40 = int_to_ptr.vmem [resolvable:$true] %s39
      %45 = dma.hbm_to_vmem [thread:$0]  %s1, 128, %s40, [#allocation6], 64, 64, 4
    $region9: #{tpu_custom_call.1} parent=1 // pred_fallthru
      _
    // Predicated region
    $region10: #{tpu_custom_call.1} parent=1 // pred_check
      _
    $region11: #{tpu_custom_call.1} parent=1 // pred_check_branch
      %47 = sbr.rel (0) target = $region13
    $region12: #{tpu_custom_call.1} parent=1 // pred_region
      _
    $region13: #{tpu_custom_call.1} parent=1 // pred_fallthru
      _
    // Predicated region
    $region14: #{tpu_custom_call.1} parent=1 // pred_check
      _
    $region15: #{tpu_custom_call.1} parent=1 // pred_check_branch
      %49 = sbr.rel (0) target = $region17
    $region16: #{tpu_custom_call.1} parent=1 // pred_region
      %s51 = ssub.s32 16, 16
      %52 = vsyncadd [#allocation6], %s51
      %s54 = sshll.u32 [#allocation7], 4
      %s55 = int_to_ptr.vmem [resolvable:$true] %s54
      %57 = dma.hbm_to_vmem [thread:$0]  %s3, 16, %s55, [#allocation6]
    $region17: #{tpu_custom_call.1} parent=1 // pred_fallthru
      _
    // Predicated region
    $region18: #{tpu_custom_call.1} parent=1 // pred_check
      _
    $region19: #{tpu_custom_call.1} parent=1 // pred_check_branch
      %59 = sbr.rel (0) target = $region21
    $region20: #{tpu_custom_call.1} parent=1 // pred_region
      %s61 = ssub.s32 256, 256
      %62 = vsyncadd [#allocation9], %s61
      %s63 = sshll.u32 [#allocation8], 4
      %s64 = int_to_ptr.vmem [resolvable:$true] %s63
      %69 = dma.hbm_to_vmem [thread:$0]  %s4, 256, %s64, [#allocation9], 64, 64, 4
    $region21: #{tpu_custom_call.1} parent=1 // pred_fallthru
      _
    // Predicated region
    $region22: #{tpu_custom_call.1} parent=1 // pred_check
      _
    $region23: #{tpu_custom_call.1} parent=1 // pred_check_branch
      %71 = sbr.rel (0) target = $region25
    $region24: #{tpu_custom_call.1} parent=1 // pred_region
      %s73 = ssub.s32 256, 256
      %74 = vsyncadd [#allocation9], %s73
      %s75 = sshll.u32 [#allocation10], 4
      %s76 = int_to_ptr.vmem [resolvable:$true] %s75
      %81 = dma.hbm_to_vmem [thread:$0]  %s5, 256, %s76, [#allocation9], 64, 64, 4
    $region25: #{tpu_custom_call.1} parent=1 // pred_fallthru
      _
    // Predicated region
    $region26: #{tpu_custom_call.1} parent=1 // pred_check
      _
    $region27: #{tpu_custom_call.1} parent=1 // pred_check_branch
      %83 = sbr.rel (0) target = $region29
    $region28: #{tpu_custom_call.1} parent=1 // pred_region
      %s85 = ssub.s32 16, 16
      %86 = vsyncadd [#allocation12], %s85
      %s88 = sshll.u32 [#allocation11], 4
      %s89 = int_to_ptr.vmem [resolvable:$true] %s88
      %91 = dma.hbm_to_vmem [thread:$0]  %s6, 16, %s89, [#allocation12]
    $region29: #{tpu_custom_call.1} parent=1 // pred_fallthru
      _
    // Predicated region
    $region30: #{tpu_custom_call.1} parent=1 // pred_check
      _
    $region31: #{tpu_custom_call.1} parent=1 // pred_check_branch
      %93 = sbr.rel (0) target = $region33
    $region32: #{tpu_custom_call.1} parent=1 // pred_region
      _
    $region33: #{tpu_custom_call.1} parent=1 // pred_fallthru
      _
    // Predicated region
    $region34: #{tpu_custom_call.1} parent=1 // pred_check
      _
    $region35: #{tpu_custom_call.1} parent=1 // pred_check_branch
      %95 = sbr.rel (0) target = $region37
    $region36: #{tpu_custom_call.1} parent=1 // pred_region
      %s97 = ssub.s32 16, 16
      %98 = vsyncadd [#allocation12], %s97
      %s100 = sshll.u32 [#allocation13], 4
      %s101 = int_to_ptr.vmem [resolvable:$true] %s100
      %103 = dma.hbm_to_vmem [thread:$0]  %s8, 16, %s101, [#allocation12]
    $region37: #{tpu_custom_call.1} parent=1 // pred_fallthru
      _
    // Predicated region
    $region38: #{tpu_custom_call.1} parent=1 // pred_check
      _
    $region39: #{tpu_custom_call.1} parent=1 // pred_check_branch
      %105 = sbr.rel (0) target = $region41
    $region40: #{tpu_custom_call.1} parent=1 // pred_region
      %s107 = ssub.s32 256, 256
      %108 = vsyncadd [#allocation15], %s107
      %s109 = sshll.u32 [#allocation14], 4
      %s110 = int_to_ptr.vmem [resolvable:$true] %s109
      %115 = dma.hbm_to_vmem [thread:$0]  %s9, 256, %s110, [#allocation15], 64, 64, 4
    $region41: #{tpu_custom_call.1} parent=1 // pred_fallthru
      _
    // Predicated region
    $region42: #{tpu_custom_call.1} parent=1 // pred_check
      _
    $region43: #{tpu_custom_call.1} parent=1 // pred_check_branch
      %117 = sbr.rel (0) target = $region45
    $region44: #{tpu_custom_call.1} parent=1 // pred_region
      _
    $region45: #{tpu_custom_call.1} parent=1 // pred_fallthru
      _
    // Predicated region
    $region46: #{tpu_custom_call.1} parent=1 // pred_check
      _
    $region47: #{tpu_custom_call.1} parent=1 // pred_check_branch
      %119 = sbr.rel (0) target = $region49
    $region48: #{tpu_custom_call.1} parent=1 // pred_region
      _
    $region49: #{tpu_custom_call.1} parent=1 // pred_fallthru
      _
    // Predicated region
    $region50: #{tpu_custom_call.1} parent=1 // pred_check
      _
    $region51: #{tpu_custom_call.1} parent=1 // pred_check_branch
      %121 = sbr.rel (0) target = $region53
    $region52: #{tpu_custom_call.1} parent=1 // pred_region
      _
    $region53: #{tpu_custom_call.1} parent=1 // pred_fallthru
      _
    // Predicated region
    $region54: #{tpu_custom_call.1} parent=1 // pred_check
      _
    $region55: #{tpu_custom_call.1} parent=1 // pred_check_branch
      %123 = sbr.rel (0) target = $region57
    $region56: #{tpu_custom_call.1} parent=1 // pred_region
      %124 = dma.done [#allocation3], 128
    $region57: #{tpu_custom_call.1} parent=1 // pred_fallthru
      _
    // Predicated region
    $region58: #{tpu_custom_call.1} parent=1 // pred_check
      _
    $region59: #{tpu_custom_call.1} parent=1 // pred_check_branch
      %126 = sbr.rel (0) target = $region61
    $region60: #{tpu_custom_call.1} parent=1 // pred_region
      %127 = dma.done [#allocation6], 128
    $region61: #{tpu_custom_call.1} parent=1 // pred_fallthru
      _
    // Predicated region
    $region62: #{tpu_custom_call.1} parent=1 // pred_check
      _
    $region63: #{tpu_custom_call.1} parent=1 // pred_check_branch
      %129 = sbr.rel (0) target = $region65
    $region64: #{tpu_custom_call.1} parent=1 // pred_region
      %130 = dma.done [#allocation6], 16
    $region65: #{tpu_custom_call.1} parent=1 // pred_fallthru
      _
    // Predicated region
    $region66: #{tpu_custom_call.1} parent=1 // pred_check
      _
    $region67: #{tpu_custom_call.1} parent=1 // pred_check_branch
      %132 = sbr.rel (0) target = $region69
    $region68: #{tpu_custom_call.1} parent=1 // pred_region
      %133 = dma.done [#allocation9], 256
    $region69: #{tpu_custom_call.1} parent=1 // pred_fallthru
      _
    // Predicated region
    $region70: #{tpu_custom_call.1} parent=1 // pred_check
      _
    $region71: #{tpu_custom_call.1} parent=1 // pred_check_branch
      %135 = sbr.rel (0) target = $region73
    $region72: #{tpu_custom_call.1} parent=1 // pred_region
      %136 = dma.done [#allocation9], 256
    $region73: #{tpu_custom_call.1} parent=1 // pred_fallthru
      _
    // Predicated region
    $region74: #{tpu_custom_call.1} parent=1 // pred_check
      _
    $region75: #{tpu_custom_call.1} parent=1 // pred_check_branch
      %138 = sbr.rel (0) target = $region77
    $region76: #{tpu_custom_call.1} parent=1 // pred_region
      %139 = dma.done [#allocation12], 16
    $region77: #{tpu_custom_call.1} parent=1 // pred_fallthru
      _
    // Predicated region
    $region78: #{tpu_custom_call.1} parent=1 // pred_check
      _
    $region79: #{tpu_custom_call.1} parent=1 // pred_check_branch
      %141 = sbr.rel (0) target = $region81
    $region80: #{tpu_custom_call.1} parent=1 // pred_region
      %142 = dma.done [#allocation12], 16
    $region81: #{tpu_custom_call.1} parent=1 // pred_fallthru
      _
    // Predicated region
    $region82: #{tpu_custom_call.1} parent=1 // pred_check
      _
    $region83: #{tpu_custom_call.1} parent=1 // pred_check_branch
      %144 = sbr.rel (0) target = $region85
    $region84: #{tpu_custom_call.1} parent=1 // pred_region
      %145 = dma.done [#allocation15], 256
    $region85: #{tpu_custom_call.1} parent=1 // pred_fallthru
      _
    %v147 = vlaneseq
    %v148 = vand.u32 %v147, 127
    %vm149 = vcmp.ge.s32.totalorder %v148, 64
    %vm150 = vcmp.lt.s32.totalorder %v148, 96
    %vm151 = vmand %vm149, %vm150
    %v152 = vld [vmem:[#allocation2] sm:$0xff]
    %v153 = vld [vmem:[#allocation5] sm:$0xf]
    %v154 = vld [vmem:[#allocation5 + $0x4] sm:$0xf]
    %v155 = vld [vmem:[%s2] sm:$0xf]
    %v156 = vld [vmem:[%s2 + $0x4] sm:$0xf]
    %v157 = vld [vmem:[%s2 + $0x8] sm:$0xf]
    %v158 = vld [vmem:[%s2 + $0xc] sm:$0xf]
    %v159 = vld [vmem:[#allocation7] sm:$0x1]
    %v160 = vpack.c.bf16 %v152, %v152
    %v162 = vlaneseq
    %v163 = vshrl.u32 %v162, 7
    %v164 = vsub.s32 0, %v163
    %v165 = vrot.slane %v159, %v164
    %v169 = vunpack.c.l.b16 %v153
    %v170 = vunpack.c.l.b16 %v154
    %v171 = vpack.c.b16 %v170, %v169
    %vm173 = vcmask 130048
    %v175 = vsel %vm173, %v160, 0
    %177 = vmatprep.subr.bf16.mxu0 0
    %178 = vmatpush1.bf16.msra.mxu0 0
    %179 = vmatprep.subr.bf16.mxu0 0
    %180 = vmatpush1.bf16.msra.mxu0 0
    %181 = vmatprep.subr.bf16.mxu0 0
    %182 = vmatpush1.bf16.msra.mxu0 0
    %183 = vmatprep.subr.bf16.mxu0 0
    %184 = vmatpush1.bf16.msra.mxu0 0
    %185 = vmatprep.subr.bf16.mxu0 0
    %186 = vmatpush1.bf16.msra.mxu0 0
    %187 = vmatprep.subr.bf16.mxu0 0
    %188 = vmatpush1.bf16.msra.mxu0 0
    %189 = vmatprep.subr.bf16.mxu0 0
    %190 = vmatpush1.bf16.msra.mxu0 0
    %191 = vmatprep.subr.bf16.mxu0 0
    %192 = vmatpush1.bf16.msra.mxu0 %v171
    %193 = vmatprep.subr.bf16.mxu0 0
    %194 = vmatpush2.bf16.msra.mxu0 0
    %195 = vmatprep.subr.bf16.mxu0 0
    %196 = vmatpush2.bf16.msra.mxu0 0
    %197 = vmatprep.subr.bf16.mxu0 0
    %198 = vmatpush2.bf16.msra.mxu0 0
    %199 = vmatprep.subr.bf16.mxu0 0
    %200 = vmatpush2.bf16.msra.mxu0 0
    %201 = vmatprep.subr.bf16.mxu0 0
    %202 = vmatpush2.bf16.msra.mxu0 0
    %203 = vmatprep.subr.bf16.mxu0 0
    %204 = vmatpush2.bf16.msra.mxu0 0
    %205 = vmatprep.subr.bf16.mxu0 0
    %206 = vmatpush2.bf16.msra.mxu0 0
    %207 = vmatprep.subr.bf16.mxu0 0
    %208 = vmatpush2.bf16.msra.mxu0 0
    %209 = vmatprep.mubr.bf16.mxu0 0
    %210 = vmatmul.mubr.bf16.gmra.mxu0 %v175
    %v211 = vpop.f32.mrf.mxu0
    %v212 = vadd.f32 %v165, %v211
    %v213 = vpop.f32.mrf.mxu0
    %v214 = vpop.f32.mrf.mxu0
    %v215 = vpop.f32.mrf.mxu0
    %216 = vdwg.mxu0
    %v221 = vunpack.c.l.b16 %v155
    %v222 = vunpack.c.l.b16 %v156
    %v223 = vunpack.c.l.b16 %v157
    %v224 = vunpack.c.l.b16 %v158
    %v225 = vpack.c.b16 %v222, %v221
    %v226 = vpack.c.b16 %v224, %v223
    %vm229 = vcmask 261120
    %v231 = vsel %vm229, 0, 0
    %233 = vmatprep.subr.bf16.mxu0 0
    %234 = vmatpush1.bf16.msra.mxu0 0
    %235 = vmatprep.subr.bf16.mxu0 0
    %236 = vmatpush1.bf16.msra.mxu0 0
    %237 = vmatprep.subr.bf16.mxu0 0
    %238 = vmatpush1.bf16.msra.mxu0 0
    %239 = vmatprep.subr.bf16.mxu0 0
    %240 = vmatpush1.bf16.msra.mxu0 0
    %241 = vmatprep.subr.bf16.mxu0 0
    %242 = vmatpush1.bf16.msra.mxu0 0
    %243 = vmatprep.subr.bf16.mxu0 0
    %244 = vmatpush1.bf16.msra.mxu0 0
    %245 = vmatprep.subr.bf16.mxu0 0
    %246 = vmatpush1.bf16.msra.mxu0 %v226
    %247 = vmatprep.subr.bf16.mxu0 0
    %248 = vmatpush1.bf16.msra.mxu0 %v225
    %249 = vmatprep.subr.bf16.mxu0 0
    %250 = vmatpush2.bf16.msra.mxu0 0
    %251 = vmatprep.subr.bf16.mxu0 0
    %252 = vmatpush2.bf16.msra.mxu0 0
    %253 = vmatprep.subr.bf16.mxu0 0
    %254 = vmatpush2.bf16.msra.mxu0 0
    %255 = vmatprep.subr.bf16.mxu0 0
    %256 = vmatpush2.bf16.msra.mxu0 0
    %257 = vmatprep.subr.bf16.mxu0 0
    %258 = vmatpush2.bf16.msra.mxu0 0
    %259 = vmatprep.subr.bf16.mxu0 0
    %260 = vmatpush2.bf16.msra.mxu0 0
    %261 = vmatprep.subr.bf16.mxu0 0
    %262 = vmatpush2.bf16.msra.mxu0 0
    %263 = vmatprep.subr.bf16.mxu0 0
    %264 = vmatpush2.bf16.msra.mxu0 0
    %265 = vmatprep.mubr.bf16.mxu0 0
    %266 = vmatmul.mubr.bf16.gmra.mxu0 %v231
    %v267 = vpop.f32.mrf.mxu0
    %v268 = vadd.f32 0.0, %v267
    %v269 = vpop.f32.mrf.mxu0
    %v270 = vpop.f32.mrf.mxu0
    %v271 = vpop.f32.mrf.mxu0
    %272 = vdwg.mxu0
    %v273 = vadd.f32 %v212, %v268
    %v274 = vtanh.pop %v273
    %v275 = vxor.u32 %v273, 2147483648
    %v276 = vmul.f32 %v275, 1.442695
    %v277 = vpow.pop %v276
    %v278 = vadd.f32 %v277, 1.0
    %v279 = vrcp.pop %v278
    %v280 = vmul.f32 1.0, %v279
    %v281 = vsel %vm151, %v274, %v280
    %v282 = vmul.f32 %v281, 0.0
    %284 = vrot.lane.b32.xlu0 %v281, 64
    %v285 = vpop.permute.xlu0 %284
    %v287 = vmul.f32 %v281, %v285
    %289 = vrot.lane.b32.xlu0 %v287, 32
    %v290 = vpop.permute.xlu0 %289
    %v292 = vadd.f32 %v282, %v290
    %v293 = vtanh.pop %v292
    %295 = vrot.lane.b32.xlu0 %v293, 64
    %v296 = vpop.permute.xlu0 %295
    %v298 = vmul.f32 %v281, %v296
    %v299 = vpack.c.bf16 %v298, %v298
    %301 = vrot.lane.b32.xlu0 %v299, 32
    %v302 = vpop.permute.xlu0 %301
    %v304 = vsel %vm229, %v302, 0
    %306 = vmatprep.subr.bf16.mxu0 0
    %307 = vmatpush1.bf16.msra.mxu0 0
    %308 = vmatprep.subr.bf16.mxu0 0
    %309 = vmatpush1.bf16.msra.mxu0 0
    %310 = vmatprep.subr.bf16.mxu0 0
    %311 = vmatpush1.bf16.msra.mxu0 0
    %312 = vmatprep.subr.bf16.mxu0 0
    %313 = vmatpush1.bf16.msra.mxu0 0
    %314 = vmatprep.subr.bf16.mxu0 0
    %315 = vmatpush1.bf16.msra.mxu0 0
    %316 = vmatprep.subr.bf16.mxu0 0
    %317 = vmatpush1.bf16.msra.mxu0 0
    %318 = vmatprep.subr.bf16.mxu0 0
    %319 = vmatpush1.bf16.msra.mxu0 %v226
    %320 = vmatprep.subr.bf16.mxu0 0
    %321 = vmatpush1.bf16.msra.mxu0 %v225
    %322 = vmatprep.subr.bf16.mxu0 0
    %323 = vmatpush2.bf16.msra.mxu0 0
    %324 = vmatprep.subr.bf16.mxu0 0
    %325 = vmatpush2.bf16.msra.mxu0 0
    %326 = vmatprep.subr.bf16.mxu0 0
    %327 = vmatpush2.bf16.msra.mxu0 0
    %328 = vmatprep.subr.bf16.mxu0 0
    %329 = vmatpush2.bf16.msra.mxu0 0
    %330 = vmatprep.subr.bf16.mxu0 0
    %331 = vmatpush2.bf16.msra.mxu0 0
    %332 = vmatprep.subr.bf16.mxu0 0
    %333 = vmatpush2.bf16.msra.mxu0 0
    %334 = vmatprep.subr.bf16.mxu0 0
    %335 = vmatpush2.bf16.msra.mxu0 0
    %336 = vmatprep.subr.bf16.mxu0 0
    %337 = vmatpush2.bf16.msra.mxu0 0
    %338 = vmatprep.mubr.bf16.mxu0 0
    %339 = vmatmul.mubr.bf16.gmra.mxu0 %v304
    %v340 = vpop.f32.mrf.mxu0
    %v341 = vadd.f32 0.0, %v340
    %v342 = vpop.f32.mrf.mxu0
    %v343 = vpop.f32.mrf.mxu0
    %v344 = vpop.f32.mrf.mxu0
    %345 = vdwg.mxu0
    %v347 = vrot.slane %v341, 7
    %v349 = vadd.f32 %v212, %v347
    %v350 = vtanh.pop %v349
    %v351 = vxor.u32 %v349, 2147483648
    %v352 = vmul.f32 %v351, 1.442695
    %v353 = vpow.pop %v352
    %v354 = vadd.f32 %v353, 1.0
    %v355 = vrcp.pop %v354
    %v356 = vmul.f32 1.0, %v355
    %v357 = vsel %vm151, %v350, %v356
    %v359 = vrot.slane %v292, 7
    %v361 = vmul.f32 %v357, %v359
    %363 = vrot.lane.b32.xlu0 %v357, 64
    %v364 = vpop.permute.xlu0 %363
    %v366 = vmul.f32 %v357, %v364
    %368 = vrot.lane.b32.xlu0 %v366, 32
    %v369 = vpop.permute.xlu0 %368
    %v371 = vadd.f32 %v361, %v369
    %v372 = vtanh.pop %v371
    %374 = vrot.lane.b32.xlu0 %v372, 64
    %v375 = vpop.permute.xlu0 %374
    %v377 = vmul.f32 %v357, %v375
    %v378 = vpack.c.bf16 %v377, %v377
    %v380 = vshrl.u32 %v378, 16
    %382 = vrot.lane.b32.xlu0 %v380, 32
    %v383 = vpop.permute.xlu0 %382
    %v385 = vsel %vm229, %v383, 0
    %387 = vmatprep.subr.bf16.mxu0 0
    %388 = vmatpush1.bf16.msra.mxu0 0
    %389 = vmatprep.subr.bf16.mxu0 0
    %390 = vmatpush1.bf16.msra.mxu0 0
    %391 = vmatprep.subr.bf16.mxu0 0
    %392 = vmatpush1.bf16.msra.mxu0 0
    %393 = vmatprep.subr.bf16.mxu0 0
    %394 = vmatpush1.bf16.msra.mxu0 0
    %395 = vmatprep.subr.bf16.mxu0 0
    %396 = vmatpush1.bf16.msra.mxu0 0
    %397 = vmatprep.subr.bf16.mxu0 0
    %398 = vmatpush1.bf16.msra.mxu0 0
    %399 = vmatprep.subr.bf16.mxu0 0
    %400 = vmatpush1.bf16.msra.mxu0 %v226
    %401 = vmatprep.subr.bf16.mxu0 0
    %402 = vmatpush1.bf16.msra.mxu0 %v225
    %403 = vmatprep.subr.bf16.mxu0 0
    %404 = vmatpush2.bf16.msra.mxu0 0
    %405 = vmatprep.subr.bf16.mxu0 0
    %406 = vmatpush2.bf16.msra.mxu0 0
    %407 = vmatprep.subr.bf16.mxu0 0
    %408 = vmatpush2.bf16.msra.mxu0 0
    %409 = vmatprep.subr.bf16.mxu0 0
    %410 = vmatpush2.bf16.msra.mxu0 0
    %411 = vmatprep.subr.bf16.mxu0 0
    %412 = vmatpush2.bf16.msra.mxu0 0
    %413 = vmatprep.subr.bf16.mxu0 0
    %414 = vmatpush2.bf16.msra.mxu0 0
    %415 = vmatprep.subr.bf16.mxu0 0
    %416 = vmatpush2.bf16.msra.mxu0 0
    %417 = vmatprep.subr.bf16.mxu0 0
    %418 = vmatpush2.bf16.msra.mxu0 0
    %419 = vmatprep.mubr.bf16.mxu0 0
    %420 = vmatmul.mubr.bf16.gmra.mxu0 %v385
    %v421 = vpop.f32.mrf.mxu0
    %v422 = vadd.f32 0.0, %v421
    %v423 = vpop.f32.mrf.mxu0
    %v424 = vpop.f32.mrf.mxu0
    %v425 = vpop.f32.mrf.mxu0
    %426 = vdwg.mxu0
    %v428 = vrot.slane %v422, 6
    %v430 = vadd.f32 %v212, %v428
    %v431 = vtanh.pop %v430
    %v432 = vxor.u32 %v430, 2147483648
    %v433 = vmul.f32 %v432, 1.442695
    %v434 = vpow.pop %v433
    %v435 = vadd.f32 %v434, 1.0
    %v436 = vrcp.pop %v435
    %v437 = vmul.f32 1.0, %v436
    %v438 = vsel %vm151, %v431, %v437
    %v440 = vrot.slane %v371, 7
    %v442 = vmul.f32 %v438, %v440
    %444 = vrot.lane.b32.xlu0 %v438, 64
    %v445 = vpop.permute.xlu0 %444
    %v447 = vmul.f32 %v438, %v445
    %449 = vrot.lane.b32.xlu0 %v447, 32
    %v450 = vpop.permute.xlu0 %449
    %v452 = vadd.f32 %v442, %v450
    %v453 = vtanh.pop %v452
    %455 = vrot.lane.b32.xlu0 %v453, 64
    %v456 = vpop.permute.xlu0 %455
    %v458 = vmul.f32 %v438, %v456
    %v459 = vpack.c.bf16 %v458, %v458
    %v461 = vrot.slane %v459, 1
    %462 = vrot.lane.b32.xlu0 %v461, 32
    %v463 = vpop.permute.xlu0 %462
    %v465 = vsel %vm229, %v463, 0
    %467 = vmatprep.subr.bf16.mxu0 0
    %468 = vmatpush1.bf16.msra.mxu0 0
    %469 = vmatprep.subr.bf16.mxu0 0
    %470 = vmatpush1.bf16.msra.mxu0 0
    %471 = vmatprep.subr.bf16.mxu0 0
    %472 = vmatpush1.bf16.msra.mxu0 0
    %473 = vmatprep.subr.bf16.mxu0 0
    %474 = vmatpush1.bf16.msra.mxu0 0
    %475 = vmatprep.subr.bf16.mxu0 0
    %476 = vmatpush1.bf16.msra.mxu0 0
    %477 = vmatprep.subr.bf16.mxu0 0
    %478 = vmatpush1.bf16.msra.mxu0 0
    %479 = vmatprep.subr.bf16.mxu0 0
    %480 = vmatpush1.bf16.msra.mxu0 %v226
    %481 = vmatprep.subr.bf16.mxu0 0
    %482 = vmatpush1.bf16.msra.mxu0 %v225
    %483 = vmatprep.subr.bf16.mxu0 0
    %484 = vmatpush2.bf16.msra.mxu0 0
    %485 = vmatprep.subr.bf16.mxu0 0
    %486 = vmatpush2.bf16.msra.mxu0 0
    %487 = vmatprep.subr.bf16.mxu0 0
    %488 = vmatpush2.bf16.msra.mxu0 0
    %489 = vmatprep.subr.bf16.mxu0 0
    %490 = vmatpush2.bf16.msra.mxu0 0
    %491 = vmatprep.subr.bf16.mxu0 0
    %492 = vmatpush2.bf16.msra.mxu0 0
    %493 = vmatprep.subr.bf16.mxu0 0
    %494 = vmatpush2.bf16.msra.mxu0 0
    %495 = vmatprep.subr.bf16.mxu0 0
    %496 = vmatpush2.bf16.msra.mxu0 0
    %497 = vmatprep.subr.bf16.mxu0 0
    %498 = vmatpush2.bf16.msra.mxu0 0
    %499 = vmatprep.mubr.bf16.mxu0 0
    %500 = vmatmul.mubr.bf16.gmra.mxu0 %v465
    %v501 = vpop.f32.mrf.mxu0
    %v502 = vadd.f32 0.0, %v501
    %v503 = vpop.f32.mrf.mxu0
    %v504 = vpop.f32.mrf.mxu0
    %v505 = vpop.f32.mrf.mxu0
    %506 = vdwg.mxu0
    %v508 = vrot.slane %v502, 5
    %v510 = vadd.f32 %v212, %v508
    %v511 = vtanh.pop %v510
    %v512 = vxor.u32 %v510, 2147483648
    %v513 = vmul.f32 %v512, 1.442695
    %v514 = vpow.pop %v513
    %v515 = vadd.f32 %v514, 1.0
    %v516 = vrcp.pop %v515
    %v517 = vmul.f32 1.0, %v516
    %v518 = vsel %vm151, %v511, %v517
    %v520 = vrot.slane %v452, 7
    %v522 = vmul.f32 %v518, %v520
    %524 = vrot.lane.b32.xlu0 %v518, 64
    %v525 = vpop.permute.xlu0 %524
    %v527 = vmul.f32 %v518, %v525
    %529 = vrot.lane.b32.xlu0 %v527, 32
    %v530 = vpop.permute.xlu0 %529
    %v532 = vadd.f32 %v522, %v530
    %v533 = vtanh.pop %v532
    %535 = vrot.lane.b32.xlu0 %v533, 64
    %v536 = vpop.permute.xlu0 %535
    %v538 = vmul.f32 %v518, %v536
    %v539 = vpack.c.bf16 %v538, %v538
    %v541 = vshrl.u32 %v539, 16
    %v543 = vrot.slane %v541, 1
    %544 = vrot.lane.b32.xlu0 %v543, 32
    %v545 = vpop.permute.xlu0 %544
    %v547 = vsel %vm229, %v545, 0
    %549 = vmatprep.subr.bf16.mxu0 0
    %550 = vmatpush1.bf16.msra.mxu0 0
    %551 = vmatprep.subr.bf16.mxu0 0
    %552 = vmatpush1.bf16.msra.mxu0 0
    %553 = vmatprep.subr.bf16.mxu0 0
    %554 = vmatpush1.bf16.msra.mxu0 0
    %555 = vmatprep.subr.bf16.mxu0 0
    %556 = vmatpush1.bf16.msra.mxu0 0
    %557 = vmatprep.subr.bf16.mxu0 0
    %558 = vmatpush1.bf16.msra.mxu0 0
    %559 = vmatprep.subr.bf16.mxu0 0
    %560 = vmatpush1.bf16.msra.mxu0 0
    %561 = vmatprep.subr.bf16.mxu0 0
    %562 = vmatpush1.bf16.msra.mxu0 %v226
    %563 = vmatprep.subr.bf16.mxu0 0
    %564 = vmatpush1.bf16.msra.mxu0 %v225
    %565 = vmatprep.subr.bf16.mxu0 0
    %566 = vmatpush2.bf16.msra.mxu0 0
    %567 = vmatprep.subr.bf16.mxu0 0
    %568 = vmatpush2.bf16.msra.mxu0 0
    %569 = vmatprep.subr.bf16.mxu0 0
    %570 = vmatpush2.bf16.msra.mxu0 0
    %571 = vmatprep.subr.bf16.mxu0 0
    %572 = vmatpush2.bf16.msra.mxu0 0
    %573 = vmatprep.subr.bf16.mxu0 0
    %574 = vmatpush2.bf16.msra.mxu0 0
    %575 = vmatprep.subr.bf16.mxu0 0
    %576 = vmatpush2.bf16.msra.mxu0 0
    %577 = vmatprep.subr.bf16.mxu0 0
    %578 = vmatpush2.bf16.msra.mxu0 0
    %579 = vmatprep.subr.bf16.mxu0 0
    %580 = vmatpush2.bf16.msra.mxu0 0
    %581 = vmatprep.mubr.bf16.mxu0 0
    %582 = vmatmul.mubr.bf16.gmra.mxu0 %v547
    %v583 = vpop.f32.mrf.mxu0
    %v584 = vadd.f32 0.0, %v583
    %v585 = vpop.f32.mrf.mxu0
    %v586 = vpop.f32.mrf.mxu0
    %v587 = vpop.f32.mrf.mxu0
    %588 = vdwg.mxu0
    %v590 = vrot.slane %v584, 4
    %v592 = vadd.f32 %v212, %v590
    %v593 = vtanh.pop %v592
    %v594 = vxor.u32 %v592, 2147483648
    %v595 = vmul.f32 %v594, 1.442695
    %v596 = vpow.pop %v595
    %v597 = vadd.f32 %v596, 1.0
    %v598 = vrcp.pop %v597
    %v599 = vmul.f32 1.0, %v598
    %v600 = vsel %vm151, %v593, %v599
    %v602 = vrot.slane %v532, 7
    %v604 = vmul.f32 %v600, %v602
    %606 = vrot.lane.b32.xlu0 %v600, 64
    %v607 = vpop.permute.xlu0 %606
    %v609 = vmul.f32 %v600, %v607
    %611 = vrot.lane.b32.xlu0 %v609, 32
    %v612 = vpop.permute.xlu0 %611
    %v614 = vadd.f32 %v604, %v612
    %v615 = vtanh.pop %v614
    %617 = vrot.lane.b32.xlu0 %v615, 64
    %v618 = vpop.permute.xlu0 %617
    %v620 = vmul.f32 %v600, %v618
    %v621 = vpack.c.bf16 %v620, %v620
    %v623 = vrot.slane %v621, 2
    %624 = vrot.lane.b32.xlu0 %v623, 32
    %v625 = vpop.permute.xlu0 %624
    %v627 = vsel %vm229, %v625, 0
    %629 = vmatprep.subr.bf16.mxu0 0
    %630 = vmatpush1.bf16.msra.mxu0 0
    %631 = vmatprep.subr.bf16.mxu0 0
    %632 = vmatpush1.bf16.msra.mxu0 0
    %633 = vmatprep.subr.bf16.mxu0 0
    %634 = vmatpush1.bf16.msra.mxu0 0
    %635 = vmatprep.subr.bf16.mxu0 0
    %636 = vmatpush1.bf16.msra.mxu0 0
    %637 = vmatprep.subr.bf16.mxu0 0
    %638 = vmatpush1.bf16.msra.mxu0 0
    %639 = vmatprep.subr.bf16.mxu0 0
    %640 = vmatpush1.bf16.msra.mxu0 0
    %641 = vmatprep.subr.bf16.mxu0 0
    %642 = vmatpush1.bf16.msra.mxu0 %v226
    %643 = vmatprep.subr.bf16.mxu0 0
    %644 = vmatpush1.bf16.msra.mxu0 %v225
    %645 = vmatprep.subr.bf16.mxu0 0
    %646 = vmatpush2.bf16.msra.mxu0 0
    %647 = vmatprep.subr.bf16.mxu0 0
    %648 = vmatpush2.bf16.msra.mxu0 0
    %649 = vmatprep.subr.bf16.mxu0 0
    %650 = vmatpush2.bf16.msra.mxu0 0
    %651 = vmatprep.subr.bf16.mxu0 0
    %652 = vmatpush2.bf16.msra.mxu0 0
    %653 = vmatprep.subr.bf16.mxu0 0
    %654 = vmatpush2.bf16.msra.mxu0 0
    %655 = vmatprep.subr.bf16.mxu0 0
    %656 = vmatpush2.bf16.msra.mxu0 0
    %657 = vmatprep.subr.bf16.mxu0 0
    %658 = vmatpush2.bf16.msra.mxu0 0
    %659 = vmatprep.subr.bf16.mxu0 0
    %660 = vmatpush2.bf16.msra.mxu0 0
    %661 = vmatprep.mubr.bf16.mxu0 0
    %662 = vmatmul.mubr.bf16.gmra.mxu0 %v627
    %v663 = vpop.f32.mrf.mxu0
    %v664 = vadd.f32 0.0, %v663
    %v665 = vpop.f32.mrf.mxu0
    %v666 = vpop.f32.mrf.mxu0
    %v667 = vpop.f32.mrf.mxu0
    %668 = vdwg.mxu0
    %v670 = vrot.slane %v664, 3
    %v672 = vadd.f32 %v212, %v670
    %v673 = vtanh.pop %v672
    %v674 = vxor.u32 %v672, 2147483648
    %v675 = vmul.f32 %v674, 1.442695
    %v676 = vpow.pop %v675
    %v677 = vadd.f32 %v676, 1.0
    %v678 = vrcp.pop %v677
    %v679 = vmul.f32 1.0, %v678
    %v680 = vsel %vm151, %v673, %v679
    %v682 = vrot.slane %v614, 7
    %v684 = vmul.f32 %v680, %v682
    %686 = vrot.lane.b32.xlu0 %v680, 64
    %v687 = vpop.permute.xlu0 %686
    %v689 = vmul.f32 %v680, %v687
    %691 = vrot.lane.b32.xlu0 %v689, 32
    %v692 = vpop.permute.xlu0 %691
    %v694 = vadd.f32 %v684, %v692
    %v695 = vtanh.pop %v694
    %697 = vrot.lane.b32.xlu0 %v695, 64
    %v698 = vpop.permute.xlu0 %697
    %v700 = vmul.f32 %v680, %v698
    %v701 = vpack.c.bf16 %v700, %v700
    %v703 = vshrl.u32 %v701, 16
    %v705 = vrot.slane %v703, 2
    %706 = vrot.lane.b32.xlu0 %v705, 32
    %v707 = vpop.permute.xlu0 %706
    %v709 = vsel %vm229, %v707, 0
    %711 = vmatprep.subr.bf16.mxu0 0
    %712 = vmatpush1.bf16.msra.mxu0 0
    %713 = vmatprep.subr.bf16.mxu0 0
    %714 = vmatpush1.bf16.msra.mxu0 0
    %715 = vmatprep.subr.bf16.mxu0 0
    %716 = vmatpush1.bf16.msra.mxu0 0
    %717 = vmatprep.subr.bf16.mxu0 0
    %718 = vmatpush1.bf16.msra.mxu0 0
    %719 = vmatprep.subr.bf16.mxu0 0
    %720 = vmatpush1.bf16.msra.mxu0 0
    %721 = vmatprep.subr.bf16.mxu0 0
    %722 = vmatpush1.bf16.msra.mxu0 0
    %723 = vmatprep.subr.bf16.mxu0 0
    %724 = vmatpush1.bf16.msra.mxu0 %v226
    %725 = vmatprep.subr.bf16.mxu0 0
    %726 = vmatpush1.bf16.msra.mxu0 %v225
    %727 = vmatprep.subr.bf16.mxu0 0
    %728 = vmatpush2.bf16.msra.mxu0 0
    %729 = vmatprep.subr.bf16.mxu0 0
    %730 = vmatpush2.bf16.msra.mxu0 0
    %731 = vmatprep.subr.bf16.mxu0 0
    %732 = vmatpush2.bf16.msra.mxu0 0
    %733 = vmatprep.subr.bf16.mxu0 0
    %734 = vmatpush2.bf16.msra.mxu0 0
    %735 = vmatprep.subr.bf16.mxu0 0
    %736 = vmatpush2.bf16.msra.mxu0 0
    %737 = vmatprep.subr.bf16.mxu0 0
    %738 = vmatpush2.bf16.msra.mxu0 0
    %739 = vmatprep.subr.bf16.mxu0 0
    %740 = vmatpush2.bf16.msra.mxu0 0
    %741 = vmatprep.subr.bf16.mxu0 0
    %742 = vmatpush2.bf16.msra.mxu0 0
    %743 = vmatprep.mubr.bf16.mxu0 0
    %744 = vmatmul.mubr.bf16.gmra.mxu0 %v709
    %v745 = vpop.f32.mrf.mxu0
    %v746 = vadd.f32 0.0, %v745
    %v747 = vpop.f32.mrf.mxu0
    %v748 = vpop.f32.mrf.mxu0
    %v749 = vpop.f32.mrf.mxu0
    %750 = vdwg.mxu0
    %v752 = vrot.slane %v746, 2
    %v754 = vadd.f32 %v212, %v752
    %v755 = vtanh.pop %v754
    %v756 = vxor.u32 %v754, 2147483648
    %v757 = vmul.f32 %v756, 1.442695
    %v758 = vpow.pop %v757
    %v759 = vadd.f32 %v758, 1.0
    %v760 = vrcp.pop %v759
    %v761 = vmul.f32 1.0, %v760
    %v762 = vsel %vm151, %v755, %v761
    %v764 = vrot.slane %v694, 7
    %v766 = vmul.f32 %v762, %v764
    %768 = vrot.lane.b32.xlu0 %v762, 64
    %v769 = vpop.permute.xlu0 %768
    %v771 = vmul.f32 %v762, %v769
    %773 = vrot.lane.b32.xlu0 %v771, 32
    %v774 = vpop.permute.xlu0 %773
    %v776 = vadd.f32 %v766, %v774
    %v777 = vtanh.pop %v776
    %779 = vrot.lane.b32.xlu0 %v777, 64
    %v780 = vpop.permute.xlu0 %779
    %v782 = vmul.f32 %v762, %v780
    %v783 = vpack.c.bf16 %v782, %v782
    %v785 = vrot.slane %v783, 3
    %786 = vrot.lane.b32.xlu0 %v785, 32
    %v787 = vpop.permute.xlu0 %786
    %v789 = vsel %vm229, %v787, 0
    %791 = vmatprep.subr.bf16.mxu0 0
    %792 = vmatpush1.bf16.msra.mxu0 0
    %793 = vmatprep.subr.bf16.mxu0 0
    %794 = vmatpush1.bf16.msra.mxu0 0
    %795 = vmatprep.subr.bf16.mxu0 0
    %796 = vmatpush1.bf16.msra.mxu0 0
    %797 = vmatprep.subr.bf16.mxu0 0
    %798 = vmatpush1.bf16.msra.mxu0 0
    %799 = vmatprep.subr.bf16.mxu0 0
    %800 = vmatpush1.bf16.msra.mxu0 0
    %801 = vmatprep.subr.bf16.mxu0 0
    %802 = vmatpush1.bf16.msra.mxu0 0
    %803 = vmatprep.subr.bf16.mxu0 0
    %804 = vmatpush1.bf16.msra.mxu0 %v226
    %805 = vmatprep.subr.bf16.mxu0 0
    %806 = vmatpush1.bf16.msra.mxu0 %v225
    %807 = vmatprep.subr.bf16.mxu0 0
    %808 = vmatpush2.bf16.msra.mxu0 0
    %809 = vmatprep.subr.bf16.mxu0 0
    %810 = vmatpush2.bf16.msra.mxu0 0
    %811 = vmatprep.subr.bf16.mxu0 0
    %812 = vmatpush2.bf16.msra.mxu0 0
    %813 = vmatprep.subr.bf16.mxu0 0
    %814 = vmatpush2.bf16.msra.mxu0 0
    %815 = vmatprep.subr.bf16.mxu0 0
    %816 = vmatpush2.bf16.msra.mxu0 0
    %817 = vmatprep.subr.bf16.mxu0 0
    %818 = vmatpush2.bf16.msra.mxu0 0
    %819 = vmatprep.subr.bf16.mxu0 0
    %820 = vmatpush2.bf16.msra.mxu0 0
    %821 = vmatprep.subr.bf16.mxu0 0
    %822 = vmatpush2.bf16.msra.mxu0 0
    %823 = vmatprep.mubr.bf16.mxu0 0
    %824 = vmatmul.mubr.bf16.gmra.mxu0 %v789
    %v825 = vpop.f32.mrf.mxu0
    %v826 = vadd.f32 0.0, %v825
    %v827 = vpop.f32.mrf.mxu0
    %v828 = vpop.f32.mrf.mxu0
    %v829 = vpop.f32.mrf.mxu0
    %830 = vdwg.mxu0
    %v832 = vrot.slane %v826, 1
    %v834 = vadd.f32 %v212, %v832
    %v835 = vtanh.pop %v834
    %v836 = vxor.u32 %v834, 2147483648
    %v837 = vmul.f32 %v836, 1.442695
    %v838 = vpow.pop %v837
    %v839 = vadd.f32 %v838, 1.0
    %v840 = vrcp.pop %v839
    %v841 = vmul.f32 1.0, %v840
    %v842 = vsel %vm151, %v835, %v841
    %v844 = vrot.slane %v776, 7
    %v846 = vmul.f32 %v842, %v844
    %848 = vrot.lane.b32.xlu0 %v842, 64
    %v849 = vpop.permute.xlu0 %848
    %v851 = vmul.f32 %v842, %v849
    %853 = vrot.lane.b32.xlu0 %v851, 32
    %v854 = vpop.permute.xlu0 %853
    %v856 = vadd.f32 %v846, %v854
    %v857 = vtanh.pop %v856
    %859 = vrot.lane.b32.xlu0 %v857, 64
    %v860 = vpop.permute.xlu0 %859
    %v862 = vmul.f32 %v842, %v860
    %vm863 = vcmask 1040384
    %v864 = vsel %vm863, %v298, %v377
    %vm865 = vcmask 1041408
    %v866 = vsel %vm865, %v864, %v458
    %vm867 = vcmask 1042432
    %v868 = vsel %vm867, %v866, %v538
    %vm869 = vcmask 1043456
    %v870 = vsel %vm869, %v868, %v620
    %vm871 = vcmask 1044480
    %v872 = vsel %vm871, %v870, %v700
    %vm873 = vcmask 1045504
    %v874 = vsel %vm873, %v872, %v782
    %vm875 = vcmask 1046528
    %v876 = vsel %vm875, %v874, %v862
    %v877 = vld [vmem:[#allocation8] sm:$0xf]
    %v878 = vld [vmem:[#allocation8 + $0x4] sm:$0xf]
    %v879 = vld [vmem:[#allocation8 + $0x8] sm:$0xf]
    %v880 = vld [vmem:[#allocation8 + $0xc] sm:$0xf]
    %v881 = vld [vmem:[#allocation10] sm:$0xf]
    %v882 = vld [vmem:[#allocation10 + $0x4] sm:$0xf]
    %v883 = vld [vmem:[#allocation10 + $0x8] sm:$0xf]
    %v884 = vld [vmem:[#allocation10 + $0xc] sm:$0xf]
    %v885 = vld [vmem:[#allocation11] sm:$0x1]
    %v886 = vpack.c.bf16 %v876, %v876
    %v888 = vlaneseq
    %v889 = vshrl.u32 %v888, 7
    %v890 = vsub.s32 0, %v889
    %v891 = vrot.slane %v885, %v890
    %894 = vrot.lane.b32.xlu0 %v886, 32
    %v895 = vpop.permute.xlu0 %894
    %v900 = vunpack.c.l.b16 %v877
    %v901 = vunpack.c.l.b16 %v878
    %v902 = vunpack.c.l.b16 %v879
    %v903 = vunpack.c.l.b16 %v880
    %v904 = vpack.c.b16 %v901, %v900
    %v905 = vpack.c.b16 %v903, %v902
    %v909 = vsel %vm229, %v895, 0
    %911 = vmatprep.subr.bf16.mxu0 0
    %912 = vmatpush1.bf16.msra.mxu0 0
    %913 = vmatprep.subr.bf16.mxu0 0
    %914 = vmatpush1.bf16.msra.mxu0 0
    %915 = vmatprep.subr.bf16.mxu0 0
    %916 = vmatpush1.bf16.msra.mxu0 0
    %917 = vmatprep.subr.bf16.mxu0 0
    %918 = vmatpush1.bf16.msra.mxu0 0
    %919 = vmatprep.subr.bf16.mxu0 0
    %920 = vmatpush1.bf16.msra.mxu0 0
    %921 = vmatprep.subr.bf16.mxu0 0
    %922 = vmatpush1.bf16.msra.mxu0 0
    %923 = vmatprep.subr.bf16.mxu0 0
    %924 = vmatpush1.bf16.msra.mxu0 %v905
    %925 = vmatprep.subr.bf16.mxu0 0
    %926 = vmatpush1.bf16.msra.mxu0 %v904
    %927 = vmatprep.subr.bf16.mxu0 0
    %928 = vmatpush2.bf16.msra.mxu0 0
    %929 = vmatprep.subr.bf16.mxu0 0
    %930 = vmatpush2.bf16.msra.mxu0 0
    %931 = vmatprep.subr.bf16.mxu0 0
    %932 = vmatpush2.bf16.msra.mxu0 0
    %933 = vmatprep.subr.bf16.mxu0 0
    %934 = vmatpush2.bf16.msra.mxu0 0
    %935 = vmatprep.subr.bf16.mxu0 0
    %936 = vmatpush2.bf16.msra.mxu0 0
    %937 = vmatprep.subr.bf16.mxu0 0
    %938 = vmatpush2.bf16.msra.mxu0 0
    %939 = vmatprep.subr.bf16.mxu0 0
    %940 = vmatpush2.bf16.msra.mxu0 0
    %941 = vmatprep.subr.bf16.mxu0 0
    %942 = vmatpush2.bf16.msra.mxu0 0
    %943 = vmatprep.mubr.bf16.mxu0 0
    %944 = vmatmul.mubr.bf16.gmra.mxu0 %v909
    %v945 = vpop.f32.mrf.mxu0
    %v946 = vadd.f32 %v891, %v945
    %v947 = vpop.f32.mrf.mxu0
    %v948 = vpop.f32.mrf.mxu0
    %v949 = vpop.f32.mrf.mxu0
    %950 = vdwg.mxu0
    %v955 = vunpack.c.l.b16 %v881
    %v956 = vunpack.c.l.b16 %v882
    %v957 = vunpack.c.l.b16 %v883
    %v958 = vunpack.c.l.b16 %v884
    %v959 = vpack.c.b16 %v956, %v955
    %v960 = vpack.c.b16 %v958, %v957
    %963 = vmatprep.subr.bf16.mxu0 0
    %964 = vmatpush1.bf16.msra.mxu0 0
    %965 = vmatprep.subr.bf16.mxu0 0
    %966 = vmatpush1.bf16.msra.mxu0 0
    %967 = vmatprep.subr.bf16.mxu0 0
    %968 = vmatpush1.bf16.msra.mxu0 0
    %969 = vmatprep.subr.bf16.mxu0 0
    %970 = vmatpush1.bf16.msra.mxu0 0
    %971 = vmatprep.subr.bf16.mxu0 0
    %972 = vmatpush1.bf16.msra.mxu0 0
    %973 = vmatprep.subr.bf16.mxu0 0
    %974 = vmatpush1.bf16.msra.mxu0 0
    %975 = vmatprep.subr.bf16.mxu0 0
    %976 = vmatpush1.bf16.msra.mxu0 %v960
    %977 = vmatprep.subr.bf16.mxu0 0
    %978 = vmatpush1.bf16.msra.mxu0 %v959
    %979 = vmatprep.subr.bf16.mxu0 0
    %980 = vmatpush2.bf16.msra.mxu0 0
    %981 = vmatprep.subr.bf16.mxu0 0
    %982 = vmatpush2.bf16.msra.mxu0 0
    %983 = vmatprep.subr.bf16.mxu0 0
    %984 = vmatpush2.bf16.msra.mxu0 0
    %985 = vmatprep.subr.bf16.mxu0 0
    %986 = vmatpush2.bf16.msra.mxu0 0
    %987 = vmatprep.subr.bf16.mxu0 0
    %988 = vmatpush2.bf16.msra.mxu0 0
    %989 = vmatprep.subr.bf16.mxu0 0
    %990 = vmatpush2.bf16.msra.mxu0 0
    %991 = vmatprep.subr.bf16.mxu0 0
    %992 = vmatpush2.bf16.msra.mxu0 0
    %993 = vmatprep.subr.bf16.mxu0 0
    %994 = vmatpush2.bf16.msra.mxu0 0
    %995 = vmatprep.mubr.bf16.mxu0 0
    %996 = vmatmul.mubr.bf16.gmra.mxu0 %v231
    %v997 = vpop.f32.mrf.mxu0
    %v998 = vadd.f32 0.0, %v997
    %v999 = vpop.f32.mrf.mxu0
    %v1000 = vpop.f32.mrf.mxu0
    %v1001 = vpop.f32.mrf.mxu0
    %1002 = vdwg.mxu0
    %v1003 = vadd.f32 %v946, %v998
    %v1004 = vtanh.pop %v1003
    %v1005 = vxor.u32 %v1003, 2147483648
    %v1006 = vmul.f32 %v1005, 1.442695
    %v1007 = vpow.pop %v1006
    %v1008 = vadd.f32 %v1007, 1.0
    %v1009 = vrcp.pop %v1008
    %v1010 = vmul.f32 1.0, %v1009
    %v1011 = vsel %vm151, %v1004, %v1010
    %v1012 = vmul.f32 %v1011, 0.0
    %1014 = vrot.lane.b32.xlu0 %v1011, 64
    %v1015 = vpop.permute.xlu0 %1014
    %v1017 = vmul.f32 %v1011, %v1015
    %1019 = vrot.lane.b32.xlu0 %v1017, 32
    %v1020 = vpop.permute.xlu0 %1019
    %v1022 = vadd.f32 %v1012, %v1020
    %v1023 = vtanh.pop %v1022
    %1025 = vrot.lane.b32.xlu0 %v1023, 64
    %v1026 = vpop.permute.xlu0 %1025
    %v1028 = vmul.f32 %v1011, %v1026
    %v1029 = vpack.c.bf16 %v1028, %v1028
    %1031 = vrot.lane.b32.xlu0 %v1029, 32
    %v1032 = vpop.permute.xlu0 %1031
    %v1034 = vsel %vm229, %v1032, 0
    %1036 = vmatprep.subr.bf16.mxu0 0
    %1037 = vmatpush1.bf16.msra.mxu0 0
    %1038 = vmatprep.subr.bf16.mxu0 0
    %1039 = vmatpush1.bf16.msra.mxu0 0
    %1040 = vmatprep.subr.bf16.mxu0 0
    %1041 = vmatpush1.bf16.msra.mxu0 0
    %1042 = vmatprep.subr.bf16.mxu0 0
    %1043 = vmatpush1.bf16.msra.mxu0 0
    %1044 = vmatprep.subr.bf16.mxu0 0
    %1045 = vmatpush1.bf16.msra.mxu0 0
    %1046 = vmatprep.subr.bf16.mxu0 0
    %1047 = vmatpush1.bf16.msra.mxu0 0
    %1048 = vmatprep.subr.bf16.mxu0 0
    %1049 = vmatpush1.bf16.msra.mxu0 %v960
    %1050 = vmatprep.subr.bf16.mxu0 0
    %1051 = vmatpush1.bf16.msra.mxu0 %v959
    %1052 = vmatprep.subr.bf16.mxu0 0
    %1053 = vmatpush2.bf16.msra.mxu0 0
    %1054 = vmatprep.subr.bf16.mxu0 0
    %1055 = vmatpush2.bf16.msra.mxu0 0
    %1056 = vmatprep.subr.bf16.mxu0 0
    %1057 = vmatpush2.bf16.msra.mxu0 0
    %1058 = vmatprep.subr.bf16.mxu0 0
    %1059 = vmatpush2.bf16.msra.mxu0 0
    %1060 = vmatprep.subr.bf16.mxu0 0
    %1061 = vmatpush2.bf16.msra.mxu0 0
    %1062 = vmatprep.subr.bf16.mxu0 0
    %1063 = vmatpush2.bf16.msra.mxu0 0
    %1064 = vmatprep.subr.bf16.mxu0 0
    %1065 = vmatpush2.bf16.msra.mxu0 0
    %1066 = vmatprep.subr.bf16.mxu0 0
    %1067 = vmatpush2.bf16.msra.mxu0 0
    %1068 = vmatprep.mubr.bf16.mxu0 0
    %1069 = vmatmul.mubr.bf16.gmra.mxu0 %v1034
    %v1070 = vpop.f32.mrf.mxu0
    %v1071 = vadd.f32 0.0, %v1070
    %v1072 = vpop.f32.mrf.mxu0
    %v1073 = vpop.f32.mrf.mxu0
    %v1074 = vpop.f32.mrf.mxu0
    %1075 = vdwg.mxu0
    %v1077 = vrot.slane %v1071, 7
    %v1079 = vadd.f32 %v946, %v1077
    %v1080 = vtanh.pop %v1079
    %v1081 = vxor.u32 %v1079, 2147483648
    %v1082 = vmul.f32 %v1081, 1.442695
    %v1083 = vpow.pop %v1082
    %v1084 = vadd.f32 %v1083, 1.0
    %v1085 = vrcp.pop %v1084
    %v1086 = vmul.f32 1.0, %v1085
    %v1087 = vsel %vm151, %v1080, %v1086
    %v1089 = vrot.slane %v1022, 7
    %v1091 = vmul.f32 %v1087, %v1089
    %1093 = vrot.lane.b32.xlu0 %v1087, 64
    %v1094 = vpop.permute.xlu0 %1093
    %v1096 = vmul.f32 %v1087, %v1094
    %1098 = vrot.lane.b32.xlu0 %v1096, 32
    %v1099 = vpop.permute.xlu0 %1098
    %v1101 = vadd.f32 %v1091, %v1099
    %v1102 = vtanh.pop %v1101
    %1104 = vrot.lane.b32.xlu0 %v1102, 64
    %v1105 = vpop.permute.xlu0 %1104
    %v1107 = vmul.f32 %v1087, %v1105
    %v1108 = vpack.c.bf16 %v1107, %v1107
    %v1110 = vshrl.u32 %v1108, 16
    %1112 = vrot.lane.b32.xlu0 %v1110, 32
    %v1113 = vpop.permute.xlu0 %1112
    %v1115 = vsel %vm229, %v1113, 0
    %1117 = vmatprep.subr.bf16.mxu0 0
    %1118 = vmatpush1.bf16.msra.mxu0 0
    %1119 = vmatprep.subr.bf16.mxu0 0
    %1120 = vmatpush1.bf16.msra.mxu0 0
    %1121 = vmatprep.subr.bf16.mxu0 0
    %1122 = vmatpush1.bf16.msra.mxu0 0
    %1123 = vmatprep.subr.bf16.mxu0 0
    %1124 = vmatpush1.bf16.msra.mxu0 0
    %1125 = vmatprep.subr.bf16.mxu0 0
    %1126 = vmatpush1.bf16.msra.mxu0 0
    %1127 = vmatprep.subr.bf16.mxu0 0
    %1128 = vmatpush1.bf16.msra.mxu0 0
    %1129 = vmatprep.subr.bf16.mxu0 0
    %1130 = vmatpush1.bf16.msra.mxu0 %v960
    %1131 = vmatprep.subr.bf16.mxu0 0
    %1132 = vmatpush1.bf16.msra.mxu0 %v959
    %1133 = vmatprep.subr.bf16.mxu0 0
    %1134 = vmatpush2.bf16.msra.mxu0 0
    %1135 = vmatprep.subr.bf16.mxu0 0
    %1136 = vmatpush2.bf16.msra.mxu0 0
    %1137 = vmatprep.subr.bf16.mxu0 0
    %1138 = vmatpush2.bf16.msra.mxu0 0
    %1139 = vmatprep.subr.bf16.mxu0 0
    %1140 = vmatpush2.bf16.msra.mxu0 0
    %1141 = vmatprep.subr.bf16.mxu0 0
    %1142 = vmatpush2.bf16.msra.mxu0 0
    %1143 = vmatprep.subr.bf16.mxu0 0
    %1144 = vmatpush2.bf16.msra.mxu0 0
    %1145 = vmatprep.subr.bf16.mxu0 0
    %1146 = vmatpush2.bf16.msra.mxu0 0
    %1147 = vmatprep.subr.bf16.mxu0 0
    %1148 = vmatpush2.bf16.msra.mxu0 0
    %1149 = vmatprep.mubr.bf16.mxu0 0
    %1150 = vmatmul.mubr.bf16.gmra.mxu0 %v1115
    %v1151 = vpop.f32.mrf.mxu0
    %v1152 = vadd.f32 0.0, %v1151
    %v1153 = vpop.f32.mrf.mxu0
    %v1154 = vpop.f32.mrf.mxu0
    %v1155 = vpop.f32.mrf.mxu0
    %1156 = vdwg.mxu0
    %v1158 = vrot.slane %v1152, 6
    %v1160 = vadd.f32 %v946, %v1158
    %v1161 = vtanh.pop %v1160
    %v1162 = vxor.u32 %v1160, 2147483648
    %v1163 = vmul.f32 %v1162, 1.442695
    %v1164 = vpow.pop %v1163
    %v1165 = vadd.f32 %v1164, 1.0
    %v1166 = vrcp.pop %v1165
    %v1167 = vmul.f32 1.0, %v1166
    %v1168 = vsel %vm151, %v1161, %v1167
    %v1170 = vrot.slane %v1101, 7
    %v1172 = vmul.f32 %v1168, %v1170
    %1174 = vrot.lane.b32.xlu0 %v1168, 64
    %v1175 = vpop.permute.xlu0 %1174
    %v1177 = vmul.f32 %v1168, %v1175
    %1179 = vrot.lane.b32.xlu0 %v1177, 32
    %v1180 = vpop.permute.xlu0 %1179
    %v1182 = vadd.f32 %v1172, %v1180
    %v1183 = vtanh.pop %v1182
    %1185 = vrot.lane.b32.xlu0 %v1183, 64
    %v1186 = vpop.permute.xlu0 %1185
    %v1188 = vmul.f32 %v1168, %v1186
    %v1189 = vpack.c.bf16 %v1188, %v1188
    %v1191 = vrot.slane %v1189, 1
    %1192 = vrot.lane.b32.xlu0 %v1191, 32
    %v1193 = vpop.permute.xlu0 %1192
    %v1195 = vsel %vm229, %v1193, 0
    %1197 = vmatprep.subr.bf16.mxu0 0
    %1198 = vmatpush1.bf16.msra.mxu0 0
    %1199 = vmatprep.subr.bf16.mxu0 0
    %1200 = vmatpush1.bf16.msra.mxu0 0
    %1201 = vmatprep.subr.bf16.mxu0 0
    %1202 = vmatpush1.bf16.msra.mxu0 0
    %1203 = vmatprep.subr.bf16.mxu0 0
    %1204 = vmatpush1.bf16.msra.mxu0 0
    %1205 = vmatprep.subr.bf16.mxu0 0
    %1206 = vmatpush1.bf16.msra.mxu0 0
    %1207 = vmatprep.subr.bf16.mxu0 0
    %1208 = vmatpush1.bf16.msra.mxu0 0
    %1209 = vmatprep.subr.bf16.mxu0 0
    %1210 = vmatpush1.bf16.msra.mxu0 %v960
    %1211 = vmatprep.subr.bf16.mxu0 0
    %1212 = vmatpush1.bf16.msra.mxu0 %v959
    %1213 = vmatprep.subr.bf16.mxu0 0
    %1214 = vmatpush2.bf16.msra.mxu0 0
    %1215 = vmatprep.subr.bf16.mxu0 0
    %1216 = vmatpush2.bf16.msra.mxu0 0
    %1217 = vmatprep.subr.bf16.mxu0 0
    %1218 = vmatpush2.bf16.msra.mxu0 0
    %1219 = vmatprep.subr.bf16.mxu0 0
    %1220 = vmatpush2.bf16.msra.mxu0 0
    %1221 = vmatprep.subr.bf16.mxu0 0
    %1222 = vmatpush2.bf16.msra.mxu0 0
    %1223 = vmatprep.subr.bf16.mxu0 0
    %1224 = vmatpush2.bf16.msra.mxu0 0
    %1225 = vmatprep.subr.bf16.mxu0 0
    %1226 = vmatpush2.bf16.msra.mxu0 0
    %1227 = vmatprep.subr.bf16.mxu0 0
    %1228 = vmatpush2.bf16.msra.mxu0 0
    %1229 = vmatprep.mubr.bf16.mxu0 0
    %1230 = vmatmul.mubr.bf16.gmra.mxu0 %v1195
    %v1231 = vpop.f32.mrf.mxu0
    %v1232 = vadd.f32 0.0, %v1231
    %v1233 = vpop.f32.mrf.mxu0
    %v1234 = vpop.f32.mrf.mxu0
    %v1235 = vpop.f32.mrf.mxu0
    %1236 = vdwg.mxu0
    %v1238 = vrot.slane %v1232, 5
    %v1240 = vadd.f32 %v946, %v1238
    %v1241 = vtanh.pop %v1240
    %v1242 = vxor.u32 %v1240, 2147483648
    %v1243 = vmul.f32 %v1242, 1.442695
    %v1244 = vpow.pop %v1243
    %v1245 = vadd.f32 %v1244, 1.0
    %v1246 = vrcp.pop %v1245
    %v1247 = vmul.f32 1.0, %v1246
    %v1248 = vsel %vm151, %v1241, %v1247
    %v1250 = vrot.slane %v1182, 7
    %v1252 = vmul.f32 %v1248, %v1250
    %1254 = vrot.lane.b32.xlu0 %v1248, 64
    %v1255 = vpop.permute.xlu0 %1254
    %v1257 = vmul.f32 %v1248, %v1255
    %1259 = vrot.lane.b32.xlu0 %v1257, 32
    %v1260 = vpop.permute.xlu0 %1259
    %v1262 = vadd.f32 %v1252, %v1260
    %v1263 = vtanh.pop %v1262
    %1265 = vrot.lane.b32.xlu0 %v1263, 64
    %v1266 = vpop.permute.xlu0 %1265
    %v1268 = vmul.f32 %v1248, %v1266
    %v1269 = vpack.c.bf16 %v1268, %v1268
    %v1271 = vshrl.u32 %v1269, 16
    %v1273 = vrot.slane %v1271, 1
    %1274 = vrot.lane.b32.xlu0 %v1273, 32
    %v1275 = vpop.permute.xlu0 %1274
    %v1277 = vsel %vm229, %v1275, 0
    %1279 = vmatprep.subr.bf16.mxu0 0
    %1280 = vmatpush1.bf16.msra.mxu0 0
    %1281 = vmatprep.subr.bf16.mxu0 0
    %1282 = vmatpush1.bf16.msra.mxu0 0
    %1283 = vmatprep.subr.bf16.mxu0 0
    %1284 = vmatpush1.bf16.msra.mxu0 0
    %1285 = vmatprep.subr.bf16.mxu0 0
    %1286 = vmatpush1.bf16.msra.mxu0 0
    %1287 = vmatprep.subr.bf16.mxu0 0
    %1288 = vmatpush1.bf16.msra.mxu0 0
    %1289 = vmatprep.subr.bf16.mxu0 0
    %1290 = vmatpush1.bf16.msra.mxu0 0
    %1291 = vmatprep.subr.bf16.mxu0 0
    %1292 = vmatpush1.bf16.msra.mxu0 %v960
    %1293 = vmatprep.subr.bf16.mxu0 0
    %1294 = vmatpush1.bf16.msra.mxu0 %v959
    %1295 = vmatprep.subr.bf16.mxu0 0
    %1296 = vmatpush2.bf16.msra.mxu0 0
    %1297 = vmatprep.subr.bf16.mxu0 0
    %1298 = vmatpush2.bf16.msra.mxu0 0
    %1299 = vmatprep.subr.bf16.mxu0 0
    %1300 = vmatpush2.bf16.msra.mxu0 0
    %1301 = vmatprep.subr.bf16.mxu0 0
    %1302 = vmatpush2.bf16.msra.mxu0 0
    %1303 = vmatprep.subr.bf16.mxu0 0
    %1304 = vmatpush2.bf16.msra.mxu0 0
    %1305 = vmatprep.subr.bf16.mxu0 0
    %1306 = vmatpush2.bf16.msra.mxu0 0
    %1307 = vmatprep.subr.bf16.mxu0 0
    %1308 = vmatpush2.bf16.msra.mxu0 0
    %1309 = vmatprep.subr.bf16.mxu0 0
    %1310 = vmatpush2.bf16.msra.mxu0 0
    %1311 = vmatprep.mubr.bf16.mxu0 0
    %1312 = vmatmul.mubr.bf16.gmra.mxu0 %v1277
    %v1313 = vpop.f32.mrf.mxu0
    %v1314 = vadd.f32 0.0, %v1313
    %v1315 = vpop.f32.mrf.mxu0
    %v1316 = vpop.f32.mrf.mxu0
    %v1317 = vpop.f32.mrf.mxu0
    %1318 = vdwg.mxu0
    %v1320 = vrot.slane %v1314, 4
    %v1322 = vadd.f32 %v946, %v1320
    %v1323 = vtanh.pop %v1322
    %v1324 = vxor.u32 %v1322, 2147483648
    %v1325 = vmul.f32 %v1324, 1.442695
    %v1326 = vpow.pop %v1325
    %v1327 = vadd.f32 %v1326, 1.0
    %v1328 = vrcp.pop %v1327
    %v1329 = vmul.f32 1.0, %v1328
    %v1330 = vsel %vm151, %v1323, %v1329
    %v1332 = vrot.slane %v1262, 7
    %v1334 = vmul.f32 %v1330, %v1332
    %1336 = vrot.lane.b32.xlu0 %v1330, 64
    %v1337 = vpop.permute.xlu0 %1336
    %v1339 = vmul.f32 %v1330, %v1337
    %1341 = vrot.lane.b32.xlu0 %v1339, 32
    %v1342 = vpop.permute.xlu0 %1341
    %v1344 = vadd.f32 %v1334, %v1342
    %v1345 = vtanh.pop %v1344
    %1347 = vrot.lane.b32.xlu0 %v1345, 64
    %v1348 = vpop.permute.xlu0 %1347
    %v1350 = vmul.f32 %v1330, %v1348
    %v1351 = vpack.c.bf16 %v1350, %v1350
    %v1353 = vrot.slane %v1351, 2
    %1354 = vrot.lane.b32.xlu0 %v1353, 32
    %v1355 = vpop.permute.xlu0 %1354
    %v1357 = vsel %vm229, %v1355, 0
    %1359 = vmatprep.subr.bf16.mxu0 0
    %1360 = vmatpush1.bf16.msra.mxu0 0
    %1361 = vmatprep.subr.bf16.mxu0 0
    %1362 = vmatpush1.bf16.msra.mxu0 0
    %1363 = vmatprep.subr.bf16.mxu0 0
    %1364 = vmatpush1.bf16.msra.mxu0 0
    %1365 = vmatprep.subr.bf16.mxu0 0
    %1366 = vmatpush1.bf16.msra.mxu0 0
    %1367 = vmatprep.subr.bf16.mxu0 0
    %1368 = vmatpush1.bf16.msra.mxu0 0
    %1369 = vmatprep.subr.bf16.mxu0 0
    %1370 = vmatpush1.bf16.msra.mxu0 0
    %1371 = vmatprep.subr.bf16.mxu0 0
    %1372 = vmatpush1.bf16.msra.mxu0 %v960
    %1373 = vmatprep.subr.bf16.mxu0 0
    %1374 = vmatpush1.bf16.msra.mxu0 %v959
    %1375 = vmatprep.subr.bf16.mxu0 0
    %1376 = vmatpush2.bf16.msra.mxu0 0
    %1377 = vmatprep.subr.bf16.mxu0 0
    %1378 = vmatpush2.bf16.msra.mxu0 0
    %1379 = vmatprep.subr.bf16.mxu0 0
    %1380 = vmatpush2.bf16.msra.mxu0 0
    %1381 = vmatprep.subr.bf16.mxu0 0
    %1382 = vmatpush2.bf16.msra.mxu0 0
    %1383 = vmatprep.subr.bf16.mxu0 0
    %1384 = vmatpush2.bf16.msra.mxu0 0
    %1385 = vmatprep.subr.bf16.mxu0 0
    %1386 = vmatpush2.bf16.msra.mxu0 0
    %1387 = vmatprep.subr.bf16.mxu0 0
    %1388 = vmatpush2.bf16.msra.mxu0 0
    %1389 = vmatprep.subr.bf16.mxu0 0
    %1390 = vmatpush2.bf16.msra.mxu0 0
    %1391 = vmatprep.mubr.bf16.mxu0 0
    %1392 = vmatmul.mubr.bf16.gmra.mxu0 %v1357
    %v1393 = vpop.f32.mrf.mxu0
    %v1394 = vadd.f32 0.0, %v1393
    %v1395 = vpop.f32.mrf.mxu0
    %v1396 = vpop.f32.mrf.mxu0
    %v1397 = vpop.f32.mrf.mxu0
    %1398 = vdwg.mxu0
    %v1400 = vrot.slane %v1394, 3
    %v1402 = vadd.f32 %v946, %v1400
    %v1403 = vtanh.pop %v1402
    %v1404 = vxor.u32 %v1402, 2147483648
    %v1405 = vmul.f32 %v1404, 1.442695
    %v1406 = vpow.pop %v1405
    %v1407 = vadd.f32 %v1406, 1.0
    %v1408 = vrcp.pop %v1407
    %v1409 = vmul.f32 1.0, %v1408
    %v1410 = vsel %vm151, %v1403, %v1409
    %v1412 = vrot.slane %v1344, 7
    %v1414 = vmul.f32 %v1410, %v1412
    %1416 = vrot.lane.b32.xlu0 %v1410, 64
    %v1417 = vpop.permute.xlu0 %1416
    %v1419 = vmul.f32 %v1410, %v1417
    %1421 = vrot.lane.b32.xlu0 %v1419, 32
    %v1422 = vpop.permute.xlu0 %1421
    %v1424 = vadd.f32 %v1414, %v1422
    %v1425 = vtanh.pop %v1424
    %1427 = vrot.lane.b32.xlu0 %v1425, 64
    %v1428 = vpop.permute.xlu0 %1427
    %v1430 = vmul.f32 %v1410, %v1428
    %v1431 = vpack.c.bf16 %v1430, %v1430
    %v1433 = vshrl.u32 %v1431, 16
    %v1435 = vrot.slane %v1433, 2
    %1436 = vrot.lane.b32.xlu0 %v1435, 32
    %v1437 = vpop.permute.xlu0 %1436
    %v1439 = vsel %vm229, %v1437, 0
    %1441 = vmatprep.subr.bf16.mxu0 0
    %1442 = vmatpush1.bf16.msra.mxu0 0
    %1443 = vmatprep.subr.bf16.mxu0 0
    %1444 = vmatpush1.bf16.msra.mxu0 0
    %1445 = vmatprep.subr.bf16.mxu0 0
    %1446 = vmatpush1.bf16.msra.mxu0 0
    %1447 = vmatprep.subr.bf16.mxu0 0
    %1448 = vmatpush1.bf16.msra.mxu0 0
    %1449 = vmatprep.subr.bf16.mxu0 0
    %1450 = vmatpush1.bf16.msra.mxu0 0
    %1451 = vmatprep.subr.bf16.mxu0 0
    %1452 = vmatpush1.bf16.msra.mxu0 0
    %1453 = vmatprep.subr.bf16.mxu0 0
    %1454 = vmatpush1.bf16.msra.mxu0 %v960
    %1455 = vmatprep.subr.bf16.mxu0 0
    %1456 = vmatpush1.bf16.msra.mxu0 %v959
    %1457 = vmatprep.subr.bf16.mxu0 0
    %1458 = vmatpush2.bf16.msra.mxu0 0
    %1459 = vmatprep.subr.bf16.mxu0 0
    %1460 = vmatpush2.bf16.msra.mxu0 0
    %1461 = vmatprep.subr.bf16.mxu0 0
    %1462 = vmatpush2.bf16.msra.mxu0 0
    %1463 = vmatprep.subr.bf16.mxu0 0
    %1464 = vmatpush2.bf16.msra.mxu0 0
    %1465 = vmatprep.subr.bf16.mxu0 0
    %1466 = vmatpush2.bf16.msra.mxu0 0
    %1467 = vmatprep.subr.bf16.mxu0 0
    %1468 = vmatpush2.bf16.msra.mxu0 0
    %1469 = vmatprep.subr.bf16.mxu0 0
    %1470 = vmatpush2.bf16.msra.mxu0 0
    %1471 = vmatprep.subr.bf16.mxu0 0
    %1472 = vmatpush2.bf16.msra.mxu0 0
    %1473 = vmatprep.mubr.bf16.mxu0 0
    %1474 = vmatmul.mubr.bf16.gmra.mxu0 %v1439
    %v1475 = vpop.f32.mrf.mxu0
    %v1476 = vadd.f32 0.0, %v1475
    %v1477 = vpop.f32.mrf.mxu0
    %v1478 = vpop.f32.mrf.mxu0
    %v1479 = vpop.f32.mrf.mxu0
    %1480 = vdwg.mxu0
    %v1482 = vrot.slane %v1476, 2
    %v1484 = vadd.f32 %v946, %v1482
    %v1485 = vtanh.pop %v1484
    %v1486 = vxor.u32 %v1484, 2147483648
    %v1487 = vmul.f32 %v1486, 1.442695
    %v1488 = vpow.pop %v1487
    %v1489 = vadd.f32 %v1488, 1.0
    %v1490 = vrcp.pop %v1489
    %v1491 = vmul.f32 1.0, %v1490
    %v1492 = vsel %vm151, %v1485, %v1491
    %v1494 = vrot.slane %v1424, 7
    %v1496 = vmul.f32 %v1492, %v1494
    %1498 = vrot.lane.b32.xlu0 %v1492, 64
    %v1499 = vpop.permute.xlu0 %1498
    %v1501 = vmul.f32 %v1492, %v1499
    %1503 = vrot.lane.b32.xlu0 %v1501, 32
    %v1504 = vpop.permute.xlu0 %1503
    %v1506 = vadd.f32 %v1496, %v1504
    %v1507 = vtanh.pop %v1506
    %1509 = vrot.lane.b32.xlu0 %v1507, 64
    %v1510 = vpop.permute.xlu0 %1509
    %v1512 = vmul.f32 %v1492, %v1510
    %v1513 = vpack.c.bf16 %v1512, %v1512
    %v1515 = vrot.slane %v1513, 3
    %1516 = vrot.lane.b32.xlu0 %v1515, 32
    %v1517 = vpop.permute.xlu0 %1516
    %v1519 = vsel %vm229, %v1517, 0
    %1521 = vmatprep.subr.bf16.mxu0 0
    %1522 = vmatpush1.bf16.msra.mxu0 0
    %1523 = vmatprep.subr.bf16.mxu0 0
    %1524 = vmatpush1.bf16.msra.mxu0 0
    %1525 = vmatprep.subr.bf16.mxu0 0
    %1526 = vmatpush1.bf16.msra.mxu0 0
    %1527 = vmatprep.subr.bf16.mxu0 0
    %1528 = vmatpush1.bf16.msra.mxu0 0
    %1529 = vmatprep.subr.bf16.mxu0 0
    %1530 = vmatpush1.bf16.msra.mxu0 0
    %1531 = vmatprep.subr.bf16.mxu0 0
    %1532 = vmatpush1.bf16.msra.mxu0 0
    %1533 = vmatprep.subr.bf16.mxu0 0
    %1534 = vmatpush1.bf16.msra.mxu0 %v960
    %1535 = vmatprep.subr.bf16.mxu0 0
    %1536 = vmatpush1.bf16.msra.mxu0 %v959
    %1537 = vmatprep.subr.bf16.mxu0 0
    %1538 = vmatpush2.bf16.msra.mxu0 0
    %1539 = vmatprep.subr.bf16.mxu0 0
    %1540 = vmatpush2.bf16.msra.mxu0 0
    %1541 = vmatprep.subr.bf16.mxu0 0
    %1542 = vmatpush2.bf16.msra.mxu0 0
    %1543 = vmatprep.subr.bf16.mxu0 0
    %1544 = vmatpush2.bf16.msra.mxu0 0
    %1545 = vmatprep.subr.bf16.mxu0 0
    %1546 = vmatpush2.bf16.msra.mxu0 0
    %1547 = vmatprep.subr.bf16.mxu0 0
    %1548 = vmatpush2.bf16.msra.mxu0 0
    %1549 = vmatprep.subr.bf16.mxu0 0
    %1550 = vmatpush2.bf16.msra.mxu0 0
    %1551 = vmatprep.subr.bf16.mxu0 0
    %1552 = vmatpush2.bf16.msra.mxu0 0
    %1553 = vmatprep.mubr.bf16.mxu0 0
    %1554 = vmatmul.mubr.bf16.gmra.mxu0 %v1519
    %v1555 = vpop.f32.mrf.mxu0
    %v1556 = vadd.f32 0.0, %v1555
    %v1557 = vpop.f32.mrf.mxu0
    %v1558 = vpop.f32.mrf.mxu0
    %v1559 = vpop.f32.mrf.mxu0
    %1560 = vdwg.mxu0
    %v1562 = vrot.slane %v1556, 1
    %v1564 = vadd.f32 %v946, %v1562
    %v1565 = vtanh.pop %v1564
    %v1566 = vxor.u32 %v1564, 2147483648
    %v1567 = vmul.f32 %v1566, 1.442695
    %v1568 = vpow.pop %v1567
    %v1569 = vadd.f32 %v1568, 1.0
    %v1570 = vrcp.pop %v1569
    %v1571 = vmul.f32 1.0, %v1570
    %v1572 = vsel %vm151, %v1565, %v1571
    %v1574 = vrot.slane %v1506, 7
    %v1576 = vmul.f32 %v1572, %v1574
    %1578 = vrot.lane.b32.xlu0 %v1572, 64
    %v1579 = vpop.permute.xlu0 %1578
    %v1581 = vmul.f32 %v1572, %v1579
    %1583 = vrot.lane.b32.xlu0 %v1581, 32
    %v1584 = vpop.permute.xlu0 %1583
    %v1586 = vadd.f32 %v1576, %v1584
    %v1587 = vtanh.pop %v1586
    %1589 = vrot.lane.b32.xlu0 %v1587, 64
    %v1590 = vpop.permute.xlu0 %1589
    %v1592 = vmul.f32 %v1572, %v1590
    %v1593 = vsel %vm863, %v1028, %v1107
    %v1594 = vsel %vm865, %v1593, %v1188
    %v1595 = vsel %vm867, %v1594, %v1268
    %v1596 = vsel %vm869, %v1595, %v1350
    %v1597 = vsel %vm871, %v1596, %v1430
    %v1598 = vsel %vm873, %v1597, %v1512
    %v1599 = vsel %vm875, %v1598, %v1592
    %v1600 = vld [vmem:[%s7] sm:$0xf]
    %v1601 = vld [vmem:[%s7 + $0x4] sm:$0xf]
    %v1602 = vld [vmem:[%s7 + $0x8] sm:$0xf]
    %v1603 = vld [vmem:[%s7 + $0xc] sm:$0xf]
    %v1604 = vld [vmem:[#allocation13] sm:$0x1]
    %v1605 = vpack.c.bf16 %v1599, %v1599
    %v1607 = vlaneseq
    %v1608 = vshrl.u32 %v1607, 7
    %v1609 = vsub.s32 0, %v1608
    %v1610 = vrot.slane %v1604, %v1609
    %1613 = vrot.lane.b32.xlu0 %v1605, 32
    %v1614 = vpop.permute.xlu0 %1613
    %v1619 = vunpack.c.l.b16 %v1600
    %v1620 = vunpack.c.l.b16 %v1601
    %v1621 = vunpack.c.l.b16 %v1602
    %v1622 = vunpack.c.l.b16 %v1603
    %v1623 = vpack.c.b16 %v1620, %v1619
    %v1624 = vpack.c.b16 %v1622, %v1621
    %v1628 = vsel %vm229, %v1614, 0
    %1630 = vmatprep.subr.bf16.mxu0 0
    %1631 = vmatpush1.bf16.msra.mxu0 0
    %1632 = vmatprep.subr.bf16.mxu0 0
    %1633 = vmatpush1.bf16.msra.mxu0 0
    %1634 = vmatprep.subr.bf16.mxu0 0
    %1635 = vmatpush1.bf16.msra.mxu0 0
    %1636 = vmatprep.subr.bf16.mxu0 0
    %1637 = vmatpush1.bf16.msra.mxu0 0
    %1638 = vmatprep.subr.bf16.mxu0 0
    %1639 = vmatpush1.bf16.msra.mxu0 0
    %1640 = vmatprep.subr.bf16.mxu0 0
    %1641 = vmatpush1.bf16.msra.mxu0 0
    %1642 = vmatprep.subr.bf16.mxu0 0
    %1643 = vmatpush1.bf16.msra.mxu0 %v1624
    %1644 = vmatprep.subr.bf16.mxu0 0
    %1645 = vmatpush1.bf16.msra.mxu0 %v1623
    %1646 = vmatprep.subr.bf16.mxu0 0
    %1647 = vmatpush2.bf16.msra.mxu0 0
    %1648 = vmatprep.subr.bf16.mxu0 0
    %1649 = vmatpush2.bf16.msra.mxu0 0
    %1650 = vmatprep.subr.bf16.mxu0 0
    %1651 = vmatpush2.bf16.msra.mxu0 0
    %1652 = vmatprep.subr.bf16.mxu0 0
    %1653 = vmatpush2.bf16.msra.mxu0 0
    %1654 = vmatprep.subr.bf16.mxu0 0
    %1655 = vmatpush2.bf16.msra.mxu0 0
    %1656 = vmatprep.subr.bf16.mxu0 0
    %1657 = vmatpush2.bf16.msra.mxu0 0
    %1658 = vmatprep.subr.bf16.mxu0 0
    %1659 = vmatpush2.bf16.msra.mxu0 0
    %1660 = vmatprep.subr.bf16.mxu0 0
    %1661 = vmatpush2.bf16.msra.mxu0 0
    %1662 = vmatprep.mubr.bf16.mxu0 0
    %1663 = vmatmul.mubr.bf16.gmra.mxu0 %v1628
    %v1664 = vpop.f32.mrf.mxu0
    %v1665 = vadd.f32 %v1610, %v1664
    %v1666 = vpop.f32.mrf.mxu0
    %v1667 = vpop.f32.mrf.mxu0
    %v1668 = vpop.f32.mrf.mxu0
    %1669 = vdwg.mxu0
    %v1670 = vtanh.pop %v1665
    %v1671 = vld [vmem:[#allocation14] sm:$0xf]
    %v1672 = vld [vmem:[#allocation14 + $0x4] sm:$0xf]
    %v1673 = vld [vmem:[#allocation14 + $0x8] sm:$0xf]
    %v1674 = vld [vmem:[#allocation14 + $0xc] sm:$0xf]
    %v1675 = vld [vmem:[%s10] sm:$0x1]
    %v1676 = vpack.c.bf16 %v1670, %v1670
    %v1678 = vlaneseq
    %v1679 = vshrl.u32 %v1678, 7
    %v1680 = vsub.s32 0, %v1679
    %v1681 = vrot.slane %v1675, %v1680
    %v1687 = vunpack.c.l.b16 %v1671
    %v1688 = vunpack.c.l.b16 %v1672
    %v1689 = vunpack.c.l.b16 %v1673
    %v1690 = vunpack.c.l.b16 %v1674
    %v1691 = vpack.c.b16 %v1688, %v1687
    %v1692 = vpack.c.b16 %v1690, %v1689
    %v1696 = vsel %vm229, %v1676, 0
    %1698 = vmatprep.subr.bf16.mxu0 0
    %1699 = vmatpush1.bf16.msra.mxu0 0
    %1700 = vmatprep.subr.bf16.mxu0 0
    %1701 = vmatpush1.bf16.msra.mxu0 0
    %1702 = vmatprep.subr.bf16.mxu0 0
    %1703 = vmatpush1.bf16.msra.mxu0 0
    %1704 = vmatprep.subr.bf16.mxu0 0
    %1705 = vmatpush1.bf16.msra.mxu0 0
    %1706 = vmatprep.subr.bf16.mxu0 0
    %1707 = vmatpush1.bf16.msra.mxu0 0
    %1708 = vmatprep.subr.bf16.mxu0 0
    %1709 = vmatpush1.bf16.msra.mxu0 0
    %1710 = vmatprep.subr.bf16.mxu0 0
    %1711 = vmatpush1.bf16.msra.mxu0 %v1692
    %1712 = vmatprep.subr.bf16.mxu0 0
    %1713 = vmatpush1.bf16.msra.mxu0 %v1691
    %1714 = vmatprep.subr.bf16.mxu0 0
    %1715 = vmatpush2.bf16.msra.mxu0 0
    %1716 = vmatprep.subr.bf16.mxu0 0
    %1717 = vmatpush2.bf16.msra.mxu0 0
    %1718 = vmatprep.subr.bf16.mxu0 0
    %1719 = vmatpush2.bf16.msra.mxu0 0
    %1720 = vmatprep.subr.bf16.mxu0 0
    %1721 = vmatpush2.bf16.msra.mxu0 0
    %1722 = vmatprep.subr.bf16.mxu0 0
    %1723 = vmatpush2.bf16.msra.mxu0 0
    %1724 = vmatprep.subr.bf16.mxu0 0
    %1725 = vmatpush2.bf16.msra.mxu0 0
    %1726 = vmatprep.subr.bf16.mxu0 0
    %1727 = vmatpush2.bf16.msra.mxu0 0
    %1728 = vmatprep.subr.bf16.mxu0 0
    %1729 = vmatpush2.bf16.msra.mxu0 0
    %1730 = vmatprep.mubr.bf16.mxu0 0
    %1731 = vmatmul.mubr.bf16.gmra.mxu0 %v1696
    %v1732 = vpop.f32.mrf.mxu0
    %v1733 = vadd.f32 %v1681, %v1732
    %v1734 = vpop.f32.mrf.mxu0
    %v1735 = vpop.f32.mrf.mxu0
    %v1736 = vpop.f32.mrf.mxu0
    %1737 = vdwg.mxu0
    %v1738 = vtanh.pop %v1733
    %v1739 = vpack.c.bf16 %v1738, %v1738
    %v1740 = vld [vmem:[%s11] sm:$0xf]
    %v1741 = vld [vmem:[%s11 + $0x4] sm:$0xf]
    %v1742 = vld [vmem:[%s11 + $0x8] sm:$0xf]
    %v1743 = vld [vmem:[%s11 + $0xc] sm:$0xf]
    %v1744 = vld [vmem:[%s12] sm:$0x1]
    %v1746 = vlaneseq
    %v1747 = vshrl.u32 %v1746, 7
    %v1748 = vsub.s32 0, %v1747
    %v1749 = vrot.slane %v1744, %v1748
    %v1755 = vunpack.c.l.b16 %v1740
    %v1756 = vunpack.c.l.b16 %v1741
    %v1757 = vunpack.c.l.b16 %v1742
    %v1758 = vunpack.c.l.b16 %v1743
    %v1759 = vpack.c.b16 %v1756, %v1755
    %v1760 = vpack.c.b16 %v1758, %v1757
    %v1764 = vsel %vm229, %v1739, 0
    %1766 = vmatprep.subr.bf16.mxu0 0
    %1767 = vmatpush1.bf16.msra.mxu0 0
    %1768 = vmatprep.subr.bf16.mxu0 0
    %1769 = vmatpush1.bf16.msra.mxu0 0
    %1770 = vmatprep.subr.bf16.mxu0 0
    %1771 = vmatpush1.bf16.msra.mxu0 0
    %1772 = vmatprep.subr.bf16.mxu0 0
    %1773 = vmatpush1.bf16.msra.mxu0 0
    %1774 = vmatprep.subr.bf16.mxu0 0
    %1775 = vmatpush1.bf16.msra.mxu0 0
    %1776 = vmatprep.subr.bf16.mxu0 0
    %1777 = vmatpush1.bf16.msra.mxu0 0
    %1778 = vmatprep.subr.bf16.mxu0 0
    %1779 = vmatpush1.bf16.msra.mxu0 %v1760
    %1780 = vmatprep.subr.bf16.mxu0 0
    %1781 = vmatpush1.bf16.msra.mxu0 %v1759
    %1782 = vmatprep.subr.bf16.mxu0 0
    %1783 = vmatpush2.bf16.msra.mxu0 0
    %1784 = vmatprep.subr.bf16.mxu0 0
    %1785 = vmatpush2.bf16.msra.mxu0 0
    %1786 = vmatprep.subr.bf16.mxu0 0
    %1787 = vmatpush2.bf16.msra.mxu0 0
    %1788 = vmatprep.subr.bf16.mxu0 0
    %1789 = vmatpush2.bf16.msra.mxu0 0
    %1790 = vmatprep.subr.bf16.mxu0 0
    %1791 = vmatpush2.bf16.msra.mxu0 0
    %1792 = vmatprep.subr.bf16.mxu0 0
    %1793 = vmatpush2.bf16.msra.mxu0 0
    %1794 = vmatprep.subr.bf16.mxu0 0
    %1795 = vmatpush2.bf16.msra.mxu0 0
    %1796 = vmatprep.subr.bf16.mxu0 0
    %1797 = vmatpush2.bf16.msra.mxu0 0
    %1798 = vmatprep.mubr.bf16.mxu0 0
    %1799 = vmatmul.mubr.bf16.gmra.mxu0 %v1764
    %v1800 = vpop.f32.mrf.mxu0
    %v1801 = vadd.f32 %v1749, %v1800
    %v1802 = vpop.f32.mrf.mxu0
    %v1803 = vpop.f32.mrf.mxu0
    %v1804 = vpop.f32.mrf.mxu0
    %1805 = vdwg.mxu0
    %vm1806 = vcmask 39936
    %v1807 = vsel %vm1806, %v1801, -inf
    %1808 = vmax.xlane.f32.xlu0 %v1807
    %v1809 = vpop.xlane.xlu0 %1808
    %v1810 = vsub.f32 %v1801, %v1809
    %v1811 = vmul.f32 %v1810, 1.442695
    %v1812 = vpow.pop %v1811
    %v1813 = vsel %vm1806, %v1812, 0.0
    %1814 = vadd.xlane.f32.xlu0 %v1813
    %v1815 = vpop.xlane.xlu0 %1814
    %v1816 = vrcp.pop %v1815
    %v1817 = vmul.f32 %v1812, %v1816
    %1818 = vst.msk [vmem:[#allocation16] sm:$0xff] %vm1806, %v1817
    // Predicated region
    $region86: #{tpu_custom_call.1} parent=1 // pred_check
      _
    $region87: #{tpu_custom_call.1} parent=1 // pred_check_branch
      %1820 = sbr.rel (0) target = $region89
    $region88: #{tpu_custom_call.1} parent=1 // pred_region
      %s1822 = ssub.s32 128, 128
      %1823 = vsyncadd [#allocation4], %s1822
      %s1825 = sshll.u32 [#allocation16], 4
      %s1826 = int_to_ptr.vmem [resolvable:$true] %s1825
      %1828 = dma.vmem_to_hbm [thread:$0]  %s1826, 128, %s13, [#allocation4]
    $region89: #{tpu_custom_call.1} parent=1 // pred_fallthru
      _
    // Predicated region
    $region90: #{tpu_custom_call.1} parent=1 // pred_check
      _
    $region91: #{tpu_custom_call.1} parent=1 // pred_check_branch
      %1830 = sbr.rel (0) target = $region93
    $region92: #{tpu_custom_call.1} parent=1 // pred_region
      %1831 = dma.done [#allocation4], 128
    $region93: #{tpu_custom_call.1} parent=1 // pred_fallthru
      _
    %1832 = vsyncpa [#allocation3], 1
    %1833 = vsyncpa [#allocation6], 1
    %1834 = vsyncpa [#allocation9], 1
    %1835 = vsyncpa [#allocation12], 1
    %1836 = vsyncpa [#allocation15], 1
    %1837 = vsyncpa [#allocation4], 1

</llo_original>
